<compile_context>
chip_gen: v6e
topology: v6e:2x2x1
jax: 0.10.0
libtpu: 0.0.40
codegen_flags: <defaults>
</compile_context>

<pallas_src>
import math
from functools import partial

import jax
import jax.numpy as jnp
from jax.experimental import pallas as pl
from jax.experimental.pallas import tpu as pltpu
from jax.scipy.special import erf as _jax_erf

_LN_EPS = 1e-5       # nn.LayerNorm default
_NEG_BIG = -1e30     # "minus infinity" for masked max (finite to stay NaN-safe)


# ----------------------------------------------------------------------------- #
# In-kernel helpers
# ----------------------------------------------------------------------------- #
def _erf_poly(z):
    # float32 erf approximation (Abramowitz & Stegun 7.1.26, max abs err ~1.5e-7),
    # built only from ops guaranteed to lower in Mosaic (exp, mul, add, where).
    a1, a2, a3, a4, a5 = 0.254829592, -0.284496736, 1.421413741, -1.453152027, 1.061405429
    p = 0.3275911
    s = jnp.where(z >= 0.0, 1.0, -1.0)
    az = jnp.abs(z)
    t = 1.0 / (1.0 + p * az)
    poly = ((((a5 * t + a4) * t + a3) * t + a2) * t + a1) * t
    return s * (1.0 - poly * jnp.exp(-az * az))


def _gelu_exact(x):
    # nn.GELU (exact, erf-based)
    return 0.5 * x * (1.0 + _erf_poly(x * (1.0 / math.sqrt(2.0))))


# ----------------------------------------------------------------------------- #
# Fused branch kernel
#   x_cls = cls + g1 * ClassAttention(LN1(u));  out = x_cls + g2 * MLP(LN2(x_cls))
# One grid step = one branch (stripe); the whole batch is resident in the block.
#   u_ref   : (R, C)  with R = B * N1, row r belongs to batch segment r // N1,
#             row b*N1 is the raw cls token of batch b (concat done on host).
#   cls_ref : (B, C)  raw cls tokens.
#   sel/selT: (C, H) / (H, C) head-selector one-hots (host constants).
#   e/et    : (R, B) / (B, R) batch-segment one-hots (host constants).
#   out_ref : (B, C)
# ----------------------------------------------------------------------------- #
def _ca_branch_kernel(u_ref, cls_ref, sel_ref, selt_ref, e_ref, et_ref,
                      ln1w, ln1b, g1, ln2w, ln2b, g2,
                      qw, kvw, pw, pb, w1, b1, w2, b2,
                      out_ref, *, batch, scale):
    C = u_ref.shape[-1]

    # ---- LayerNorm over channels, all rows / all batches at once: (R, C) ----
    x = u_ref[...]
    mu = jnp.mean(x, axis=-1, keepdims=True)
    xc = x - mu
    var = jnp.mean(xc * xc, axis=-1, keepdims=True)
    xn = xc * jax.lax.rsqrt(var + _LN_EPS) * ln1w[...] + ln1b[...]

    # ---- fused K/V projection: one (R, C) x (C, 2C) MXU matmul ----
    kv = jnp.dot(xn, kvw[...], preferred_element_type=jnp.float32)      # (R, 2C)
    k = kv[:, :C]
    v = kv[:, C:]

    # ---- batched query path from the raw cls tokens.
    #      LayerNorm is per-token, so LN1(u)[:, 0] == LN1(cls): one (B,C)x(C,C) matmul.
    ct = cls_ref[...]                                                   # (B, C)
    cmu = jnp.mean(ct, axis=-1, keepdims=True)
    cc = ct - cmu
    cvar = jnp.mean(cc * cc, axis=-1, keepdims=True)
    ctn = cc * jax.lax.rsqrt(cvar + _LN_EPS) * ln1w[...] + ln1b[...]
    q = jnp.dot(ctn, qw[...], preferred_element_type=jnp.float32) * scale   # (B, C)

    # ---- per-head scores via head-selector matmul (no lane-splitting reshapes) ----
    E = e_ref[...]                                                      # (R, B) 0/1
    q_rows = jnp.dot(E, q, preferred_element_type=jnp.float32)          # (R, C): row r -> q[batch(r)]
    scores = jnp.dot(k * q_rows, sel_ref[...],
                     preferred_element_type=jnp.float32)                # (R, H)

    # ---- softmax over the keys of each batch segment ----
    # exact per-segment max, unrolled over the small static batch; E columns are masks.
    m_rows = jnp.zeros_like(scores)
    for b in range(batch):
        seg = E[:, b:b + 1]                                             # (R, 1) 0/1 mask
        masked = scores * seg + _NEG_BIG * (1.0 - seg)
        m_b = jnp.max(masked, axis=0, keepdims=True)                    # (1, H)
        m_rows = m_rows + seg * m_b
    ex = jnp.exp(scores - m_rows)                                       # (R, H)
    denom = jnp.dot(et_ref[...], ex, preferred_element_type=jnp.float32)      # (B, H) segment sums
    denom_rows = jnp.dot(E, denom, preferred_element_type=jnp.float32)        # (R, H)
    attn = ex * pl.reciprocal(denom_rows, approx=True)                  # (R, H), EUP reciprocal

    # ---- weighted value sum per batch segment, then output projection ----
    attn_full = jnp.dot(attn, selt_ref[...], preferred_element_type=jnp.float32)   # (R, C)
    ctx = jnp.dot(et_ref[...], attn_full * v, preferred_element_type=jnp.float32)  # (B, C)
    x_attn = jnp.dot(ctx, pw[...], preferred_element_type=jnp.float32) + pb[...]   # (B, C)

    x1 = ct + g1[...] * x_attn                                          # (B, C)

    # ---- LayerNorm + MLP (fc1 -> GELU -> fc2), batched over all cls rows ----
    mu2 = jnp.mean(x1, axis=-1, keepdims=True)
    xc2 = x1 - mu2
    var2 = jnp.mean(xc2 * xc2, axis=-1, keepdims=True)
    x1n = xc2 * jax.lax.rsqrt(var2 + _LN_EPS) * ln2w[...] + ln2b[...]

    h = jnp.dot(x1n, w1[...], preferred_element_type=jnp.float32) + b1[...]
    h = _gelu_exact(h)
    y = jnp.dot(h, w2[...], preferred_element_type=jnp.float32) + b2[...]

    out_ref[...] = x1 + g2[...] * y                                     # dense (B, C) store


_BRANCH_PARAMS = ['ln1_w', 'ln1_b', 'gamma1', 'ln2_w', 'ln2_b', 'gamma2']   # per-branch (stacked)


def _run_branches(u_stack, cls_stack, branch_params, shared_params, num_heads):
    """Run S branches that share attention/MLP weights in ONE pallas_call.

    u_stack   : (S, B*N1, C) flattened token rows (cls row first per batch segment)
    cls_stack : (S, B, C)    raw cls tokens
    branch_params[k] : (S, 1, C) per-branch LayerNorm / gamma parameters
    shared_params    : dict with q_w,k_w,v_w,proj_w,proj_b,fc1_w,fc1_b,fc2_w,fc2_b
    returns   : (S, B, C)
    """
    S, R, C = u_stack.shape
    B = cls_stack.shape[1]
    N1 = R // B
    H = num_heads
    Dh = C // H
    scale = Dh ** (-0.5)

    # Host-precomputed constants (hoisted out of the kernel body).
    sel = (jnp.arange(C)[:, None] // Dh == jnp.arange(H)[None, :]).astype(jnp.float32)   # (C, H)
    selT = jnp.transpose(sel)                                                            # (H, C)
    E = (jnp.arange(R)[:, None] // N1 == jnp.arange(B)[None, :]).astype(jnp.float32)     # (R, B)
    ET = jnp.transpose(E)                                                                # (B, R)

    kvw = jnp.concatenate([shared_params['k_w'], shared_params['v_w']], axis=1)          # (C, 2C)

    branch_arrays = [branch_params[k] for k in _BRANCH_PARAMS]                           # (S, 1, C) each
    shared_arrays = [shared_params['q_w'], kvw,
                     shared_params['proj_w'], shared_params['proj_b'],
                     shared_params['fc1_w'], shared_params['fc1_b'],
                     shared_params['fc2_w'], shared_params['fc2_b']]

    def full_spec(a):
        nd = a.ndim
        return pl.BlockSpec(a.shape, lambda s, _nd=nd: (0,) * _nd)

    in_specs = (
        [pl.BlockSpec((None, R, C), lambda s: (s, 0, 0)),     # u rows for branch s
         pl.BlockSpec((None, B, C), lambda s: (s, 0, 0))]     # cls tokens for branch s
        + [full_spec(a) for a in (sel, selT, E, ET)]
        + [pl.BlockSpec((None, 1, C), lambda s: (s, 0, 0)) for _ in branch_arrays]
        + [full_spec(a) for a in shared_arrays]
    )
    out_spec = pl.BlockSpec((None, B, C), lambda s: (s, 0, 0))

    kernel = partial(_ca_branch_kernel, batch=B, scale=scale)
    return pl.pallas_call(
        kernel,
        grid=(S,),
        in_specs=in_specs,
        out_specs=out_spec,
        out_shape=jax.ShapeDtypeStruct((S, B, C), jnp.float32),
        # Branches are independent -> "parallel" lets v7x's two TensorCores split them.
        compiler_params=pltpu.CompilerParams(dimension_semantics=("parallel",)),
    )(u_stack, cls_stack, sel, selT, E, ET, *branch_arrays, *shared_arrays)


def _flat_tokens(cls_tok, feat):
    """(B,1,C) cls + (B,N,C) feat -> (B*(1+N), C) rows (host-side, free in XLA)."""
    u = jnp.concatenate([cls_tok, feat], axis=1)
    B, N1, C = u.shape
    return u.reshape(B * N1, C)


def _stack_branch_params(param_dicts):
    return {k: jnp.stack([p[k] for p in param_dicts], axis=0) for k in _BRANCH_PARAMS}


def layerscale_block_ca_forward(global_feat, local_feats, cls_tokens, p_global, p_locals, num_heads):
    """Forward pass of LayerScale_Block_CA. Returns list of (B, 1, C_i) cls outputs."""
    outs = []

    # ---- global branch: one pallas_call, whole batch resident in one block ----
    u_g = _flat_tokens(cls_tokens[0], global_feat)[None]              # (1, B*(1+Ng), C)
    cls_g = cls_tokens[0][:, 0, :][None]                              # (1, B, C)
    out_g = _run_branches(u_g, cls_g, _stack_branch_params([p_global]), p_global, num_heads)
    outs.append(out_g[0][:, None, :])                                 # (B, 1, C)

    # ---- local branches merged into ONE pallas_call (attn2/mlp2 weights are shared
    #      across stripes in the module; per-stripe LN/gamma are grid-indexed) ----
    S = len(local_feats)
    if S > 0:
        u_l = jnp.stack([_flat_tokens(cls_tokens[i + 1], local_feats[i]) for i in range(S)], axis=0)
        cls_l = jnp.stack([cls_tokens[i + 1][:, 0, :] for i in range(S)], axis=0)
        out_l = _run_branches(u_l, cls_l, _stack_branch_params(p_locals), p_locals[0], num_heads)
        for i in range(S):
            outs.append(out_l[i][:, None, :])                         # (B, 1, C2)
    return outs


# ----------------------------------------------------------------------------- #
# Pure-JAX reference (mirrors the PyTorch module exactly, eval mode)
# ----------------------------------------------------------------------------- #
def _layernorm_ref(x, w, b):
    mu = jnp.mean(x, -1, keepdims=True)
    var = jnp.mean((x - mu) ** 2, -1, keepdims=True)
    return (x - mu) / jnp.sqrt(var + _LN_EPS) * w + b


def _class_attention_ref(x, p, num_heads):
    B, N, C = x.shape
    Dh = C // num_heads
    scale = Dh ** (-0.5)
    q = (x[:, 0] @ p['q_w']).reshape(B, 1, num_heads, Dh).transpose(0, 2, 1, 3) * scale
    k = (x @ p['k_w']).reshape(B, N, num_heads, Dh).transpose(0, 2, 1, 3)
    v = (x @ p['v_w']).reshape(B, N, num_heads, Dh).transpose(0, 2, 1, 3)
    attn = jax.nn.softmax(q @ jnp.swapaxes(k, -1, -2), axis=-1)
    xc = (attn @ v).transpose(0, 2, 1, 3).reshape(B, 1, C)
    return xc @ p['proj_w'] + p['proj_b']


def _mlp_ref(x, p):
    h = x @ p['fc1_w'] + p['fc1_b']
    h = 0.5 * h * (1.0 + _jax_erf(h / jnp.sqrt(2.0)))
    return h @ p['fc2_w'] + p['fc2_b']


def _block_ref(u, cls_tok, p, num_heads):
    x1 = cls_tok + p['gamma1'] * _class_attention_ref(_layernorm_ref(u, p['ln1_w'], p['ln1_b']), p, num_heads)
    x1 = x1 + p['gamma2'] * _mlp_ref(_layernorm_ref(x1, p['ln2_w'], p['ln2_b']), p)
    return x1


def forward_ref(global_feat, local_feats, cls_tokens, p_global, p_locals, num_heads):
    u1 = jnp.concatenate([cls_tokens[0], global_feat], axis=1)
    outs = [_block_ref(u1, cls_tokens[0], p_global, num_heads)]
    for i, lf in enumerate(local_feats):
        u = jnp.concatenate([cls_tokens[i + 1], lf], axis=1)
        outs.append(_block_ref(u, cls_tokens[i + 1], p_locals[i], num_heads))
    return outs


# ----------------------------------------------------------------------------- #
# Deterministic parameter init (shapes from LayerScale_Block_CA.__init__)
# ----------------------------------------------------------------------------- #
def _linear_w(key, fan_in, fan_out):
    return jax.random.normal(key, (fan_in, fan_out), jnp.float32) * 0.02


def _linear_b(key, fan_out):
    return jax.random.normal(key, (1, fan_out), jnp.float32) * 0.02


def init_attn_params(key, C):
    kq, kk, kv, kp, kpb = jax.random.split(key, 5)
    return dict(q_w=_linear_w(kq, C, C), k_w=_linear_w(kk, C, C), v_w=_linear_w(kv, C, C),
                proj_w=_linear_w(kp, C, C), proj_b=_linear_b(kpb, C))   # qkv_bias=False; proj has bias


def init_mlp_params(key, C, hid):
    k1, kb1, k2, kb2 = jax.random.split(key, 4)
    return dict(fc1_w=_linear_w(k1, C, hid), fc1_b=_linear_b(kb1, hid),
                fc2_w=_linear_w(k2, hid, C), fc2_b=_linear_b(kb2, C))


def init_ls_params(key, C, init_values):
    # Learnable LayerNorm/gamma parameters; perturbed around their PyTorch init so
    # the per-stripe grid indexing in the merged local kernel is actually exercised.
    ks = jax.random.split(key, 6)
    n = lambda k: jax.random.normal(k, (1, C), jnp.float32)
    return dict(ln1_w=1.0 + 0.05 * n(ks[0]), ln1_b=0.05 * n(ks[1]),
                gamma1=init_values * (1.0 + 0.5 * n(ks[2])),
                ln2_w=1.0 + 0.05 * n(ks[3]), ln2_b=0.05 * n(ks[4]),
                gamma2=init_values * (1.0 + 0.5 * n(ks[5])))


if __name__ == "__main__":
    # Small shapes consistent with the module's forward.
    B, Ng, Nl = 2, 16, 8
    dim, num_heads, num_stripes = 32, 4, 2
    mlp_ratio = 4.0
    # init_values is a constructor arg (default 1e-4); use 0.1 so the correctness
    # check meaningfully exercises the attention / MLP path. Shapes are unchanged.
    init_values = 0.1
    dim2 = dim // num_stripes
    hid = int(dim * mlp_ratio)  # NOTE: mlp2 also uses dim*mlp_ratio hidden (as in the module)

    root = jax.random.PRNGKey(0)
    k_in, k_par = jax.random.split(root)

    # ---- inputs ----
    ks = jax.random.split(k_in, 2 + num_stripes * 2)
    global_feat = jax.random.normal(ks[0], (B, Ng, dim), jnp.float32)
    cls_tokens = [jax.random.normal(ks[1], (B, 1, dim), jnp.float32)]
    local_feats = []
    for i in range(num_stripes):
        local_feats.append(jax.random.normal(ks[2 + 2 * i], (B, Nl, dim2), jnp.float32))
        cls_tokens.append(jax.random.normal(ks[3 + 2 * i], (B, 1, dim2), jnp.float32))

    # ---- parameters ----
    ka, km, ka2, km2, kg, kls = jax.random.split(k_par, 6)
    p_global = {**init_attn_params(ka, dim), **init_mlp_params(km, dim, hid),
                **init_ls_params(kg, dim, init_values)}
    shared_local = {**init_attn_params(ka2, dim2), **init_mlp_params(km2, dim2, hid)}  # attn2 / mlp2 shared
    ls_keys = jax.random.split(kls, num_stripes)
    p_locals = [{**shared_local, **init_ls_params(ls_keys[i], dim2, init_values)}
                for i in range(num_stripes)]

    # ---- run Pallas kernels (2 pallas_calls total: global + merged locals) ----
    outs = layerscale_block_ca_forward(global_feat, local_feats, cls_tokens,
                                       p_global, p_locals, num_heads)
    outs = [jax.block_until_ready(o) for o in outs]

    # ---- verify against pure-JAX reference ----
    # Tolerance accounts for the EUP approximate reciprocal in the softmax and the
    # polynomial erf in GELU (both well below this bound for these magnitudes).
    refs = forward_ref(global_feat, local_feats, cls_tokens, p_global, p_locals, num_heads)
    for o, r in zip(outs, refs):
        assert o.shape == r.shape and o.dtype == r.dtype
        assert jnp.allclose(o, r, atol=2e-5, rtol=2e-5), float(jnp.max(jnp.abs(o - r)))

    print("KERNEL_OK")
</pallas_src>

<mosaic_0001>
module attributes {stable_mosaic.version = 11 : i64} {
  func.func @_ca_branch_kernel(%arg0: i32, %arg1: memref<1x34x32xf32, #tpu.memory_space<vmem>>, %arg2: memref<1x2x32xf32, #tpu.memory_space<vmem>>, %arg3: memref<32x4xf32, #tpu.memory_space<vmem>>, %arg4: memref<4x32xf32, #tpu.memory_space<vmem>>, %arg5: memref<34x2xf32, #tpu.memory_space<vmem>>, %arg6: memref<2x34xf32, #tpu.memory_space<vmem>>, %arg7: memref<1x1x32xf32, #tpu.memory_space<vmem>>, %arg8: memref<1x1x32xf32, #tpu.memory_space<vmem>>, %arg9: memref<1x1x32xf32, #tpu.memory_space<vmem>>, %arg10: memref<1x1x32xf32, #tpu.memory_space<vmem>>, %arg11: memref<1x1x32xf32, #tpu.memory_space<vmem>>, %arg12: memref<1x1x32xf32, #tpu.memory_space<vmem>>, %arg13: memref<32x32xf32, #tpu.memory_space<vmem>>, %arg14: memref<32x64xf32, #tpu.memory_space<vmem>>, %arg15: memref<32x32xf32, #tpu.memory_space<vmem>>, %arg16: memref<1x32xf32, #tpu.memory_space<vmem>>, %arg17: memref<32x128xf32, #tpu.memory_space<vmem>>, %arg18: memref<1x128xf32, #tpu.memory_space<vmem>>, %arg19: memref<128x32xf32, #tpu.memory_space<vmem>>, %arg20: memref<1x32xf32, #tpu.memory_space<vmem>>, %arg21: memref<1x2x32xf32, #tpu.memory_space<vmem>>) attributes {dimension_semantics = [#tpu.dimension_semantics<parallel>], iteration_bounds = array<i64: 1>, scalar_prefetch = 0 : i64, scratch_operands = 0 : i64, tpu.core_type = #tpu.core_type<tc>, window_params = [{transform_indices = @transform_0, window_bounds = array<i64: 1, 34, 32>}, {transform_indices = @transform_1, window_bounds = array<i64: 1, 2, 32>}, {pipeline_mode = #tpu.pipeline_mode<synchronous>, transform_indices = @transform_2, window_bounds = array<i64: 32, 4>}, {pipeline_mode = #tpu.pipeline_mode<synchronous>, transform_indices = @transform_3, window_bounds = array<i64: 4, 32>}, {pipeline_mode = #tpu.pipeline_mode<synchronous>, transform_indices = @transform_4, window_bounds = array<i64: 34, 2>}, {pipeline_mode = #tpu.pipeline_mode<synchronous>, transform_indices = @transform_5, window_bounds = array<i64: 2, 34>}, {transform_indices = @transform_6, window_bounds = array<i64: 1, 1, 32>}, {transform_indices = @transform_7, window_bounds = array<i64: 1, 1, 32>}, {transform_indices = @transform_8, window_bounds = array<i64: 1, 1, 32>}, {transform_indices = @transform_9, window_bounds = array<i64: 1, 1, 32>}, {transform_indices = @transform_10, window_bounds = array<i64: 1, 1, 32>}, {transform_indices = @transform_11, window_bounds = array<i64: 1, 1, 32>}, {pipeline_mode = #tpu.pipeline_mode<synchronous>, transform_indices = @transform_12, window_bounds = array<i64: 32, 32>}, {pipeline_mode = #tpu.pipeline_mode<synchronous>, transform_indices = @transform_13, window_bounds = array<i64: 32, 64>}, {pipeline_mode = #tpu.pipeline_mode<synchronous>, transform_indices = @transform_14, window_bounds = array<i64: 32, 32>}, {pipeline_mode = #tpu.pipeline_mode<synchronous>, transform_indices = @transform_15, window_bounds = array<i64: 1, 32>}, {pipeline_mode = #tpu.pipeline_mode<synchronous>, transform_indices = @transform_16, window_bounds = array<i64: 32, 128>}, {pipeline_mode = #tpu.pipeline_mode<synchronous>, transform_indices = @transform_17, window_bounds = array<i64: 1, 128>}, {pipeline_mode = #tpu.pipeline_mode<synchronous>, transform_indices = @transform_18, window_bounds = array<i64: 128, 32>}, {pipeline_mode = #tpu.pipeline_mode<synchronous>, transform_indices = @transform_19, window_bounds = array<i64: 1, 32>}, {transform_indices = @transform_20, window_bounds = array<i64: 1, 2, 32>}]} {
    %c0 = arith.constant 0 : index
    %c0_0 = arith.constant 0 : index
    %c0_1 = arith.constant 0 : index
    %0 = vector.load %arg1[%c0, %c0_0, %c0_1] : memref<1x34x32xf32, #tpu.memory_space<vmem>>, vector<1x34x32xf32>
    %1 = vector.shape_cast %0 : vector<1x34x32xf32> to vector<34x32xf32>
    %cst = arith.constant dense<0.000000e+00> : vector<34xf32>
    %2 = vector.multi_reduction <add>, %1, %cst [1] : vector<34x32xf32> to vector<34xf32>
    %3 = vector.shape_cast %2 : vector<34xf32> to vector<34x1xf32>
    %cst_2 = arith.constant 3.200000e+01 : f32
    %4 = vector.broadcast %cst_2 : f32 to vector<34x1xf32>
    %5 = arith.divf %3, %4 : vector<34x1xf32>
    %6 = vector.broadcast %5 : vector<34x1xf32> to vector<34x32xf32>
    %7 = arith.subf %1, %6 : vector<34x32xf32>
    %8 = arith.mulf %7, %7 : vector<34x32xf32>
    %cst_3 = arith.constant dense<0.000000e+00> : vector<34xf32>
    %9 = vector.multi_reduction <add>, %8, %cst_3 [1] : vector<34x32xf32> to vector<34xf32>
    %10 = vector.shape_cast %9 : vector<34xf32> to vector<34x1xf32>
    %cst_4 = arith.constant 3.200000e+01 : f32
    %11 = vector.broadcast %cst_4 : f32 to vector<34x1xf32>
    %12 = arith.divf %10, %11 : vector<34x1xf32>
    %cst_5 = arith.constant 9.99999974E-6 : f32
    %13 = vector.broadcast %cst_5 : f32 to vector<34x1xf32>
    %14 = arith.addf %12, %13 : vector<34x1xf32>
    %15 = math.rsqrt %14 : vector<34x1xf32>
    %16 = vector.broadcast %15 : vector<34x1xf32> to vector<34x32xf32>
    %17 = arith.mulf %7, %16 : vector<34x32xf32>
    %c0_6 = arith.constant 0 : index
    %c0_7 = arith.constant 0 : index
    %c0_8 = arith.constant 0 : index
    %18 = vector.load %arg7[%c0_6, %c0_7, %c0_8] : memref<1x1x32xf32, #tpu.memory_space<vmem>>, vector<1x1x32xf32>
    %19 = vector.shape_cast %18 : vector<1x1x32xf32> to vector<1x32xf32>
    %20 = vector.broadcast %19 : vector<1x32xf32> to vector<34x32xf32>
    %21 = arith.mulf %17, %20 : vector<34x32xf32>
    %c0_9 = arith.constant 0 : index
    %c0_10 = arith.constant 0 : index
    %c0_11 = arith.constant 0 : index
    %22 = vector.load %arg8[%c0_9, %c0_10, %c0_11] : memref<1x1x32xf32, #tpu.memory_space<vmem>>, vector<1x1x32xf32>
    %23 = vector.shape_cast %22 : vector<1x1x32xf32> to vector<1x32xf32>
    %24 = vector.broadcast %23 : vector<1x32xf32> to vector<34x32xf32>
    %25 = arith.addf %21, %24 : vector<34x32xf32>
    %c0_12 = arith.constant 0 : index
    %c0_13 = arith.constant 0 : index
    %26 = vector.load %arg14[%c0_12, %c0_13] : memref<32x64xf32, #tpu.memory_space<vmem>>, vector<32x64xf32>
    %cst_14 = arith.constant dense<0.000000e+00> : vector<34x64xf32>
    %27 = tpu.matmul %25, %26, %cst_14 {dimension_numbers = #tpu.dot_dimension_numbers<[1], [0], [0], [1], [0, 0, 1, 1], [], []>} : vector<34x32xf32>, vector<32x64xf32>, vector<34x64xf32> -> vector<34x64xf32>
    %28 = vector.extract_strided_slice %27 {offsets = [0, 0], sizes = [34, 32], strides = [1, 1]} : vector<34x64xf32> to vector<34x32xf32>
    %29 = vector.extract_strided_slice %27 {offsets = [0, 32], sizes = [34, 32], strides = [1, 1]} : vector<34x64xf32> to vector<34x32xf32>
    %c0_15 = arith.constant 0 : index
    %c0_16 = arith.constant 0 : index
    %c0_17 = arith.constant 0 : index
    %30 = vector.load %arg2[%c0_15, %c0_16, %c0_17] : memref<1x2x32xf32, #tpu.memory_space<vmem>>, vector<1x2x32xf32>
    %31 = vector.shape_cast %30 : vector<1x2x32xf32> to vector<2x32xf32>
    %cst_18 = arith.constant dense<0.000000e+00> : vector<2xf32>
    %32 = vector.multi_reduction <add>, %31, %cst_18 [1] : vector<2x32xf32> to vector<2xf32>
    %33 = vector.shape_cast %32 : vector<2xf32> to vector<2x1xf32>
    %cst_19 = arith.constant 3.200000e+01 : f32
    %34 = vector.broadcast %cst_19 : f32 to vector<2x1xf32>
    %35 = arith.divf %33, %34 : vector<2x1xf32>
    %36 = vector.broadcast %35 : vector<2x1xf32> to vector<2x32xf32>
    %37 = arith.subf %31, %36 : vector<2x32xf32>
    %38 = arith.mulf %37, %37 : vector<2x32xf32>
    %cst_20 = arith.constant dense<0.000000e+00> : vector<2xf32>
    %39 = vector.multi_reduction <add>, %38, %cst_20 [1] : vector<2x32xf32> to vector<2xf32>
    %40 = vector.shape_cast %39 : vector<2xf32> to vector<2x1xf32>
    %cst_21 = arith.constant 3.200000e+01 : f32
    %41 = vector.broadcast %cst_21 : f32 to vector<2x1xf32>
    %42 = arith.divf %40, %41 : vector<2x1xf32>
    %cst_22 = arith.constant 9.99999974E-6 : f32
    %43 = vector.broadcast %cst_22 : f32 to vector<2x1xf32>
    %44 = arith.addf %42, %43 : vector<2x1xf32>
    %45 = math.rsqrt %44 : vector<2x1xf32>
    %46 = vector.broadcast %45 : vector<2x1xf32> to vector<2x32xf32>
    %47 = arith.mulf %37, %46 : vector<2x32xf32>
    %c0_23 = arith.constant 0 : index
    %c0_24 = arith.constant 0 : index
    %c0_25 = arith.constant 0 : index
    %48 = vector.load %arg7[%c0_23, %c0_24, %c0_25] : memref<1x1x32xf32, #tpu.memory_space<vmem>>, vector<1x1x32xf32>
    %49 = vector.shape_cast %48 : vector<1x1x32xf32> to vector<1x32xf32>
    %50 = vector.broadcast %49 : vector<1x32xf32> to vector<2x32xf32>
    %51 = arith.mulf %47, %50 : vector<2x32xf32>
    %c0_26 = arith.constant 0 : index
    %c0_27 = arith.constant 0 : index
    %c0_28 = arith.constant 0 : index
    %52 = vector.load %arg8[%c0_26, %c0_27, %c0_28] : memref<1x1x32xf32, #tpu.memory_space<vmem>>, vector<1x1x32xf32>
    %53 = vector.shape_cast %52 : vector<1x1x32xf32> to vector<1x32xf32>
    %54 = vector.broadcast %53 : vector<1x32xf32> to vector<2x32xf32>
    %55 = arith.addf %51, %54 : vector<2x32xf32>
    %c0_29 = arith.constant 0 : index
    %c0_30 = arith.constant 0 : index
    %56 = vector.load %arg13[%c0_29, %c0_30] : memref<32x32xf32, #tpu.memory_space<vmem>>, vector<32x32xf32>
    %cst_31 = arith.constant dense<0.000000e+00> : vector<2x32xf32>
    %57 = tpu.matmul %55, %56, %cst_31 {dimension_numbers = #tpu.dot_dimension_numbers<[1], [0], [0], [1], [0, 0, 1, 1], [], []>} : vector<2x32xf32>, vector<32x32xf32>, vector<2x32xf32> -> vector<2x32xf32>
    %cst_32 = arith.constant 0.353553385 : f32
    %58 = vector.broadcast %cst_32 : f32 to vector<2x32xf32>
    %59 = arith.mulf %57, %58 : vector<2x32xf32>
    %c0_33 = arith.constant 0 : index
    %c0_34 = arith.constant 0 : index
    %60 = vector.load %arg5[%c0_33, %c0_34] : memref<34x2xf32, #tpu.memory_space<vmem>>, vector<34x2xf32>
    %cst_35 = arith.constant dense<0.000000e+00> : vector<34x32xf32>
    %61 = tpu.matmul %60, %59, %cst_35 {dimension_numbers = #tpu.dot_dimension_numbers<[1], [0], [0], [1], [0, 0, 1, 1], [], []>} : vector<34x2xf32>, vector<2x32xf32>, vector<34x32xf32> -> vector<34x32xf32>
    %62 = arith.mulf %28, %61 : vector<34x32xf32>
    %c0_36 = arith.constant 0 : index
    %c0_37 = arith.constant 0 : index
    %63 = vector.load %arg3[%c0_36, %c0_37] : memref<32x4xf32, #tpu.memory_space<vmem>>, vector<32x4xf32>
    %cst_38 = arith.constant dense<0.000000e+00> : vector<34x4xf32>
    %64 = tpu.matmul %62, %63, %cst_38 {dimension_numbers = #tpu.dot_dimension_numbers<[1], [0], [0], [1], [0, 0, 1, 1], [], []>} : vector<34x32xf32>, vector<32x4xf32>, vector<34x4xf32> -> vector<34x4xf32>
    %cst_39 = arith.constant 0.000000e+00 : f32
    %65 = vector.broadcast %cst_39 : f32 to vector<34x4xf32>
    %66 = vector.extract_strided_slice %60 {offsets = [0, 0], sizes = [34, 1], strides = [1, 1]} : vector<34x2xf32> to vector<34x1xf32>
    %67 = vector.broadcast %66 : vector<34x1xf32> to vector<34x4xf32>
    %68 = arith.mulf %64, %67 : vector<34x4xf32>
    %cst_40 = arith.constant 1.000000e+00 : f32
    %69 = vector.broadcast %cst_40 : f32 to vector<34x1xf32>
    %70 = arith.subf %69, %66 : vector<34x1xf32>
    %cst_41 = arith.constant -1.000000e+30 : f32
    %71 = vector.broadcast %cst_41 : f32 to vector<34x1xf32>
    %72 = arith.mulf %71, %70 : vector<34x1xf32>
    %73 = vector.broadcast %72 : vector<34x1xf32> to vector<34x4xf32>
    %74 = arith.addf %68, %73 : vector<34x4xf32>
    %cst_42 = arith.constant dense<0xFF800000> : vector<4xf32>
    %75 = vector.multi_reduction <maximumf>, %74, %cst_42 [0] : vector<34x4xf32> to vector<4xf32>
    %76 = vector.shape_cast %75 : vector<4xf32> to vector<1x4xf32>
    %77 = vector.broadcast %66 : vector<34x1xf32> to vector<34x4xf32>
    %78 = vector.broadcast %76 : vector<1x4xf32> to vector<34x4xf32>
    %79 = arith.mulf %77, %78 : vector<34x4xf32>
    %80 = arith.addf %65, %79 : vector<34x4xf32>
    %81 = vector.extract_strided_slice %60 {offsets = [0, 1], sizes = [34, 1], strides = [1, 1]} : vector<34x2xf32> to vector<34x1xf32>
    %82 = vector.broadcast %81 : vector<34x1xf32> to vector<34x4xf32>
    %83 = arith.mulf %64, %82 : vector<34x4xf32>
    %cst_43 = arith.constant 1.000000e+00 : f32
    %84 = vector.broadcast %cst_43 : f32 to vector<34x1xf32>
    %85 = arith.subf %84, %81 : vector<34x1xf32>
    %cst_44 = arith.constant -1.000000e+30 : f32
    %86 = vector.broadcast %cst_44 : f32 to vector<34x1xf32>
    %87 = arith.mulf %86, %85 : vector<34x1xf32>
    %88 = vector.broadcast %87 : vector<34x1xf32> to vector<34x4xf32>
    %89 = arith.addf %83, %88 : vector<34x4xf32>
    %cst_45 = arith.constant dense<0xFF800000> : vector<4xf32>
    %90 = vector.multi_reduction <maximumf>, %89, %cst_45 [0] : vector<34x4xf32> to vector<4xf32>
    %91 = vector.shape_cast %90 : vector<4xf32> to vector<1x4xf32>
    %92 = vector.broadcast %81 : vector<34x1xf32> to vector<34x4xf32>
    %93 = vector.broadcast %91 : vector<1x4xf32> to vector<34x4xf32>
    %94 = arith.mulf %92, %93 : vector<34x4xf32>
    %95 = arith.addf %80, %94 : vector<34x4xf32>
    %96 = arith.subf %64, %95 : vector<34x4xf32>
    %97 = math.exp %96 : vector<34x4xf32>
    %c0_46 = arith.constant 0 : index
    %c0_47 = arith.constant 0 : index
    %98 = vector.load %arg6[%c0_46, %c0_47] : memref<2x34xf32, #tpu.memory_space<vmem>>, vector<2x34xf32>
    %cst_48 = arith.constant dense<0.000000e+00> : vector<2x4xf32>
    %99 = tpu.matmul %98, %97, %cst_48 {dimension_numbers = #tpu.dot_dimension_numbers<[1], [0], [0], [1], [0, 0, 1, 1], [], []>} : vector<2x34xf32>, vector<34x4xf32>, vector<2x4xf32> -> vector<2x4xf32>
    %cst_49 = arith.constant dense<0.000000e+00> : vector<34x4xf32>
    %100 = tpu.matmul %60, %99, %cst_49 {dimension_numbers = #tpu.dot_dimension_numbers<[1], [0], [0], [1], [0, 0, 1, 1], [], []>} : vector<34x2xf32>, vector<2x4xf32>, vector<34x4xf32> -> vector<34x4xf32>
    %101 = tpu.reciprocal %100 {approx = true} : vector<34x4xf32> -> vector<34x4xf32>
    %102 = arith.mulf %97, %101 : vector<34x4xf32>
    %c0_50 = arith.constant 0 : index
    %c0_51 = arith.constant 0 : index
    %103 = vector.load %arg4[%c0_50, %c0_51] : memref<4x32xf32, #tpu.memory_space<vmem>>, vector<4x32xf32>
    %cst_52 = arith.constant dense<0.000000e+00> : vector<34x32xf32>
    %104 = tpu.matmul %102, %103, %cst_52 {dimension_numbers = #tpu.dot_dimension_numbers<[1], [0], [0], [1], [0, 0, 1, 1], [], []>} : vector<34x4xf32>, vector<4x32xf32>, vector<34x32xf32> -> vector<34x32xf32>
    %c0_53 = arith.constant 0 : index
    %c0_54 = arith.constant 0 : index
    %105 = vector.load %arg6[%c0_53, %c0_54] : memref<2x34xf32, #tpu.memory_space<vmem>>, vector<2x34xf32>
    %106 = arith.mulf %104, %29 : vector<34x32xf32>
    %cst_55 = arith.constant dense<0.000000e+00> : vector<2x32xf32>
    %107 = tpu.matmul %105, %106, %cst_55 {dimension_numbers = #tpu.dot_dimension_numbers<[1], [0], [0], [1], [0, 0, 1, 1], [], []>} : vector<2x34xf32>, vector<34x32xf32>, vector<2x32xf32> -> vector<2x32xf32>
    %c0_56 = arith.constant 0 : index
    %c0_57 = arith.constant 0 : index
    %108 = vector.load %arg15[%c0_56, %c0_57] : memref<32x32xf32, #tpu.memory_space<vmem>>, vector<32x32xf32>
    %cst_58 = arith.constant dense<0.000000e+00> : vector<2x32xf32>
    %109 = tpu.matmul %107, %108, %cst_58 {dimension_numbers = #tpu.dot_dimension_numbers<[1], [0], [0], [1], [0, 0, 1, 1], [], []>} : vector<2x32xf32>, vector<32x32xf32>, vector<2x32xf32> -> vector<2x32xf32>
    %c0_59 = arith.constant 0 : index
    %c0_60 = arith.constant 0 : index
    %110 = vector.load %arg16[%c0_59, %c0_60] : memref<1x32xf32, #tpu.memory_space<vmem>>, vector<1x32xf32>
    %111 = vector.broadcast %110 : vector<1x32xf32> to vector<2x32xf32>
    %112 = arith.addf %109, %111 : vector<2x32xf32>
    %c0_61 = arith.constant 0 : index
    %c0_62 = arith.constant 0 : index
    %c0_63 = arith.constant 0 : index
    %113 = vector.load %arg9[%c0_61, %c0_62, %c0_63] : memref<1x1x32xf32, #tpu.memory_space<vmem>>, vector<1x1x32xf32>
    %114 = vector.shape_cast %113 : vector<1x1x32xf32> to vector<1x32xf32>
    %115 = vector.broadcast %114 : vector<1x32xf32> to vector<2x32xf32>
    %116 = arith.mulf %115, %112 : vector<2x32xf32>
    %117 = arith.addf %31, %116 : vector<2x32xf32>
    %cst_64 = arith.constant dense<0.000000e+00> : vector<2xf32>
    %118 = vector.multi_reduction <add>, %117, %cst_64 [1] : vector<2x32xf32> to vector<2xf32>
    %119 = vector.shape_cast %118 : vector<2xf32> to vector<2x1xf32>
    %cst_65 = arith.constant 3.200000e+01 : f32
    %120 = vector.broadcast %cst_65 : f32 to vector<2x1xf32>
    %121 = arith.divf %119, %120 : vector<2x1xf32>
    %122 = vector.broadcast %121 : vector<2x1xf32> to vector<2x32xf32>
    %123 = arith.subf %117, %122 : vector<2x32xf32>
    %124 = arith.mulf %123, %123 : vector<2x32xf32>
    %cst_66 = arith.constant dense<0.000000e+00> : vector<2xf32>
    %125 = vector.multi_reduction <add>, %124, %cst_66 [1] : vector<2x32xf32> to vector<2xf32>
    %126 = vector.shape_cast %125 : vector<2xf32> to vector<2x1xf32>
    %cst_67 = arith.constant 3.200000e+01 : f32
    %127 = vector.broadcast %cst_67 : f32 to vector<2x1xf32>
    %128 = arith.divf %126, %127 : vector<2x1xf32>
    %cst_68 = arith.constant 9.99999974E-6 : f32
    %129 = vector.broadcast %cst_68 : f32 to vector<2x1xf32>
    %130 = arith.addf %128, %129 : vector<2x1xf32>
    %131 = math.rsqrt %130 : vector<2x1xf32>
    %132 = vector.broadcast %131 : vector<2x1xf32> to vector<2x32xf32>
    %133 = arith.mulf %123, %132 : vector<2x32xf32>
    %c0_69 = arith.constant 0 : index
    %c0_70 = arith.constant 0 : index
    %c0_71 = arith.constant 0 : index
    %134 = vector.load %arg10[%c0_69, %c0_70, %c0_71] : memref<1x1x32xf32, #tpu.memory_space<vmem>>, vector<1x1x32xf32>
    %135 = vector.shape_cast %134 : vector<1x1x32xf32> to vector<1x32xf32>
    %136 = vector.broadcast %135 : vector<1x32xf32> to vector<2x32xf32>
    %137 = arith.mulf %133, %136 : vector<2x32xf32>
    %c0_72 = arith.constant 0 : index
    %c0_73 = arith.constant 0 : index
    %c0_74 = arith.constant 0 : index
    %138 = vector.load %arg11[%c0_72, %c0_73, %c0_74] : memref<1x1x32xf32, #tpu.memory_space<vmem>>, vector<1x1x32xf32>
    %139 = vector.shape_cast %138 : vector<1x1x32xf32> to vector<1x32xf32>
    %140 = vector.broadcast %139 : vector<1x32xf32> to vector<2x32xf32>
    %141 = arith.addf %137, %140 : vector<2x32xf32>
    %c0_75 = arith.constant 0 : index
    %c0_76 = arith.constant 0 : index
    %142 = vector.load %arg17[%c0_75, %c0_76] : memref<32x128xf32, #tpu.memory_space<vmem>>, vector<32x128xf32>
    %cst_77 = arith.constant dense<0.000000e+00> : vector<2x128xf32>
    %143 = tpu.matmul %141, %142, %cst_77 {dimension_numbers = #tpu.dot_dimension_numbers<[1], [0], [0], [1], [0, 0, 1, 1], [], []>} : vector<2x32xf32>, vector<32x128xf32>, vector<2x128xf32> -> vector<2x128xf32>
    %c0_78 = arith.constant 0 : index
    %c0_79 = arith.constant 0 : index
    %144 = vector.load %arg18[%c0_78, %c0_79] : memref<1x128xf32, #tpu.memory_space<vmem>>, vector<1x128xf32>
    %145 = vector.broadcast %144 : vector<1x128xf32> to vector<2x128xf32>
    %146 = arith.addf %143, %145 : vector<2x128xf32>
    %cst_80 = arith.constant 5.000000e-01 : f32
    %147 = vector.broadcast %cst_80 : f32 to vector<2x128xf32>
    %148 = arith.mulf %147, %146 : vector<2x128xf32>
    %cst_81 = arith.constant 0.707106769 : f32
    %149 = vector.broadcast %cst_81 : f32 to vector<2x128xf32>
    %150 = arith.mulf %146, %149 : vector<2x128xf32>
    %cst_82 = arith.constant 0.000000e+00 : f32
    %151 = vector.broadcast %cst_82 : f32 to vector<2x128xf32>
    %152 = arith.cmpf oge, %150, %151 : vector<2x128xf32>
    %cst_83 = arith.constant 1.000000e+00 : f32
    %cst_84 = arith.constant -1.000000e+00 : f32
    %153 = vector.broadcast %cst_83 : f32 to vector<2x128xf32>
    %154 = vector.broadcast %cst_84 : f32 to vector<2x128xf32>
    %155 = arith.select %152, %153, %154 : vector<2x128xi1>, vector<2x128xf32>
    %156 = math.absf %150 : vector<2x128xf32>
    %cst_85 = arith.constant 0.327591091 : f32
    %157 = vector.broadcast %cst_85 : f32 to vector<2x128xf32>
    %158 = arith.mulf %157, %156 : vector<2x128xf32>
    %cst_86 = arith.constant 1.000000e+00 : f32
    %159 = vector.broadcast %cst_86 : f32 to vector<2x128xf32>
    %160 = arith.addf %159, %158 : vector<2x128xf32>
    %cst_87 = arith.constant 1.000000e+00 : f32
    %161 = vector.broadcast %cst_87 : f32 to vector<2x128xf32>
    %162 = arith.divf %161, %160 : vector<2x128xf32>
    %cst_88 = arith.constant 1.06140542 : f32
    %163 = vector.broadcast %cst_88 : f32 to vector<2x128xf32>
    %164 = arith.mulf %163, %162 : vector<2x128xf32>
    %cst_89 = arith.constant -1.45315206 : f32
    %165 = vector.broadcast %cst_89 : f32 to vector<2x128xf32>
    %166 = arith.addf %164, %165 : vector<2x128xf32>
    %167 = arith.mulf %166, %162 : vector<2x128xf32>
    %cst_90 = arith.constant 1.42141378 : f32
    %168 = vector.broadcast %cst_90 : f32 to vector<2x128xf32>
    %169 = arith.addf %167, %168 : vector<2x128xf32>
    %170 = arith.mulf %169, %162 : vector<2x128xf32>
    %cst_91 = arith.constant -0.284496725 : f32
    %171 = vector.broadcast %cst_91 : f32 to vector<2x128xf32>
    %172 = arith.addf %170, %171 : vector<2x128xf32>
    %173 = arith.mulf %172, %162 : vector<2x128xf32>
    %cst_92 = arith.constant 0.254829586 : f32
    %174 = vector.broadcast %cst_92 : f32 to vector<2x128xf32>
    %175 = arith.addf %173, %174 : vector<2x128xf32>
    %176 = arith.mulf %175, %162 : vector<2x128xf32>
    %cst_93 = arith.constant 0.000000e+00 : f32
    %177 = vector.broadcast %cst_93 : f32 to vector<2x128xf32>
    %178 = arith.subf %177, %156 : vector<2x128xf32>
    %179 = arith.mulf %178, %156 : vector<2x128xf32>
    %180 = math.exp %179 : vector<2x128xf32>
    %181 = arith.mulf %176, %180 : vector<2x128xf32>
    %cst_94 = arith.constant 1.000000e+00 : f32
    %182 = vector.broadcast %cst_94 : f32 to vector<2x128xf32>
    %183 = arith.subf %182, %181 : vector<2x128xf32>
    %184 = arith.mulf %155, %183 : vector<2x128xf32>
    %cst_95 = arith.constant 1.000000e+00 : f32
    %185 = vector.broadcast %cst_95 : f32 to vector<2x128xf32>
    %186 = arith.addf %185, %184 : vector<2x128xf32>
    %187 = arith.mulf %148, %186 : vector<2x128xf32>
    %c0_96 = arith.constant 0 : index
    %c0_97 = arith.constant 0 : index
    %188 = vector.load %arg19[%c0_96, %c0_97] : memref<128x32xf32, #tpu.memory_space<vmem>>, vector<128x32xf32>
    %cst_98 = arith.constant dense<0.000000e+00> : vector<2x32xf32>
    %189 = tpu.matmul %187, %188, %cst_98 {dimension_numbers = #tpu.dot_dimension_numbers<[1], [0], [0], [1], [0, 0, 1, 1], [], []>} : vector<2x128xf32>, vector<128x32xf32>, vector<2x32xf32> -> vector<2x32xf32>
    %c0_99 = arith.constant 0 : index
    %c0_100 = arith.constant 0 : index
    %190 = vector.load %arg20[%c0_99, %c0_100] : memref<1x32xf32, #tpu.memory_space<vmem>>, vector<1x32xf32>
    %191 = vector.broadcast %190 : vector<1x32xf32> to vector<2x32xf32>
    %192 = arith.addf %189, %191 : vector<2x32xf32>
    %c0_101 = arith.constant 0 : index
    %c0_102 = arith.constant 0 : index
    %c0_103 = arith.constant 0 : index
    %193 = vector.load %arg12[%c0_101, %c0_102, %c0_103] : memref<1x1x32xf32, #tpu.memory_space<vmem>>, vector<1x1x32xf32>
    %194 = vector.shape_cast %193 : vector<1x1x32xf32> to vector<1x32xf32>
    %195 = vector.broadcast %194 : vector<1x32xf32> to vector<2x32xf32>
    %196 = arith.mulf %195, %192 : vector<2x32xf32>
    %197 = arith.addf %117, %196 : vector<2x32xf32>
    %c0_104 = arith.constant 0 : index
    %c0_105 = arith.constant 0 : index
    %c0_106 = arith.constant 0 : index
    %198 = vector.load %arg21[%c0_104, %c0_105, %c0_106] : memref<1x2x32xf32, #tpu.memory_space<vmem>>, vector<1x2x32xf32>
    %199 = vector.shape_cast %198 : vector<1x2x32xf32> to vector<2x32xf32>
    %200 = vector.shape_cast %197 : vector<2x32xf32> to vector<1x2x32xf32>
    tpu.vector_store %arg21[%c0_104, %c0_105, %c0_106], %200 {strides = array<i32>} : memref<1x2x32xf32, #tpu.memory_space<vmem>>, vector<1x2x32xf32>,
    return
  }
  func.func @transform_0(%arg0: i32) -> (i32, i32, i32) {
    %c0_i32 = arith.constant 0 : i32
    %c0_i32_0 = arith.constant 0 : i32
    %c0_i32_1 = arith.constant 0 : i32
    return %arg0, %c0_i32, %c0_i32_0 : i32, i32, i32
  }
  func.func @transform_1(%arg0: i32) -> (i32, i32, i32) {
    %c0_i32 = arith.constant 0 : i32
    %c0_i32_0 = arith.constant 0 : i32
    %c0_i32_1 = arith.constant 0 : i32
    return %arg0, %c0_i32, %c0_i32_0 : i32, i32, i32
  }
  func.func @transform_2(%arg0: i32) -> (i32, i32) {
    %c0_i32 = arith.constant 0 : i32
    %c0_i32_0 = arith.constant 0 : i32
    %c0_i32_1 = arith.constant 0 : i32
    return %c0_i32, %c0_i32_0 : i32, i32
  }
  func.func @transform_3(%arg0: i32) -> (i32, i32) {
    %c0_i32 = arith.constant 0 : i32
    %c0_i32_0 = arith.constant 0 : i32
    %c0_i32_1 = arith.constant 0 : i32
    return %c0_i32, %c0_i32_0 : i32, i32
  }
  func.func @transform_4(%arg0: i32) -> (i32, i32) {
    %c0_i32 = arith.constant 0 : i32
    %c0_i32_0 = arith.constant 0 : i32
    %c0_i32_1 = arith.constant 0 : i32
    return %c0_i32, %c0_i32_0 : i32, i32
  }
  func.func @transform_5(%arg0: i32) -> (i32, i32) {
    %c0_i32 = arith.constant 0 : i32
    %c0_i32_0 = arith.constant 0 : i32
    %c0_i32_1 = arith.constant 0 : i32
    return %c0_i32, %c0_i32_0 : i32, i32
  }
  func.func @transform_6(%arg0: i32) -> (i32, i32, i32) {
    %c0_i32 = arith.constant 0 : i32
    %c0_i32_0 = arith.constant 0 : i32
    %c0_i32_1 = arith.constant 0 : i32
    return %arg0, %c0_i32, %c0_i32_0 : i32, i32, i32
  }
  func.func @transform_7(%arg0: i32) -> (i32, i32, i32) {
    %c0_i32 = arith.constant 0 : i32
    %c0_i32_0 = arith.constant 0 : i32
    %c0_i32_1 = arith.constant 0 : i32
    return %arg0, %c0_i32, %c0_i32_0 : i32, i32, i32
  }
  func.func @transform_8(%arg0: i32) -> (i32, i32, i32) {
    %c0_i32 = arith.constant 0 : i32
    %c0_i32_0 = arith.constant 0 : i32
    %c0_i32_1 = arith.constant 0 : i32
    return %arg0, %c0_i32, %c0_i32_0 : i32, i32, i32
  }
  func.func @transform_9(%arg0: i32) -> (i32, i32, i32) {
    %c0_i32 = arith.constant 0 : i32
    %c0_i32_0 = arith.constant 0 : i32
    %c0_i32_1 = arith.constant 0 : i32
    return %arg0, %c0_i32, %c0_i32_0 : i32, i32, i32
  }
  func.func @transform_10(%arg0: i32) -> (i32, i32, i32) {
    %c0_i32 = arith.constant 0 : i32
    %c0_i32_0 = arith.constant 0 : i32
    %c0_i32_1 = arith.constant 0 : i32
    return %arg0, %c0_i32, %c0_i32_0 : i32, i32, i32
  }
  func.func @transform_11(%arg0: i32) -> (i32, i32, i32) {
    %c0_i32 = arith.constant 0 : i32
    %c0_i32_0 = arith.constant 0 : i32
    %c0_i32_1 = arith.constant 0 : i32
    return %arg0, %c0_i32, %c0_i32_0 : i32, i32, i32
  }
  func.func @transform_12(%arg0: i32) -> (i32, i32) {
    %c0_i32 = arith.constant 0 : i32
    %c0_i32_0 = arith.constant 0 : i32
    %c0_i32_1 = arith.constant 0 : i32
    return %c0_i32, %c0_i32_0 : i32, i32
  }
  func.func @transform_13(%arg0: i32) -> (i32, i32) {
    %c0_i32 = arith.constant 0 : i32
    %c0_i32_0 = arith.constant 0 : i32
    %c0_i32_1 = arith.constant 0 : i32
    return %c0_i32, %c0_i32_0 : i32, i32
  }
  func.func @transform_14(%arg0: i32) -> (i32, i32) {
    %c0_i32 = arith.constant 0 : i32
    %c0_i32_0 = arith.constant 0 : i32
    %c0_i32_1 = arith.constant 0 : i32
    return %c0_i32, %c0_i32_0 : i32, i32
  }
  func.func @transform_15(%arg0: i32) -> (i32, i32) {
    %c0_i32 = arith.constant 0 : i32
    %c0_i32_0 = arith.constant 0 : i32
    %c0_i32_1 = arith.constant 0 : i32
    return %c0_i32, %c0_i32_0 : i32, i32
  }
  func.func @transform_16(%arg0: i32) -> (i32, i32) {
    %c0_i32 = arith.constant 0 : i32
    %c0_i32_0 = arith.constant 0 : i32
    %c0_i32_1 = arith.constant 0 : i32
    return %c0_i32, %c0_i32_0 : i32, i32
  }
  func.func @transform_17(%arg0: i32) -> (i32, i32) {
    %c0_i32 = arith.constant 0 : i32
    %c0_i32_0 = arith.constant 0 : i32
    %c0_i32_1 = arith.constant 0 : i32
    return %c0_i32, %c0_i32_0 : i32, i32
  }
  func.func @transform_18(%arg0: i32) -> (i32, i32) {
    %c0_i32 = arith.constant 0 : i32
    %c0_i32_0 = arith.constant 0 : i32
    %c0_i32_1 = arith.constant 0 : i32
    return %c0_i32, %c0_i32_0 : i32, i32
  }
  func.func @transform_19(%arg0: i32) -> (i32, i32) {
    %c0_i32 = arith.constant 0 : i32
    %c0_i32_0 = arith.constant 0 : i32
    %c0_i32_1 = arith.constant 0 : i32
    return %c0_i32, %c0_i32_0 : i32, i32
  }
  func.func @transform_20(%arg0: i32) -> (i32, i32, i32) {
    %c0_i32 = arith.constant 0 : i32
    %c0_i32_0 = arith.constant 0 : i32
    %c0_i32_1 = arith.constant 0 : i32
    return %arg0, %c0_i32, %c0_i32_0 : i32, i32, i32
  }
}

</mosaic_0001>

<llo_original>
// kernel: tpu_custom_call.1
$region0: #{tpu_custom_call.1}
  #allocation0 [shape = 'u32[]', space=smem, size = 0x4, offset = 0x4, fixed_abs, tag = 'smem constant byte address 0x4 - core index']
  #allocation1 [shape = 'u32[144,128]{1,0:T(1,128)}', space=vmem, size = 0x12000, scoped, tag = 'internal scratch']
  %s0 = inlined_call_operand.vmem [shape: f32[1,34,32], index: 0, kind: input, shape index: {}]
  %s1 = inlined_call_operand.vmem [shape: f32[1,2,32], index: 1, kind: input, shape index: {}]
  %s2 = inlined_call_operand.vmem [shape: f32[32,4], index: 2, kind: input, shape index: {}]
  %s3 = inlined_call_operand.vmem [shape: f32[4,32], index: 3, kind: input, shape index: {}]
  %s4 = inlined_call_operand.vmem [shape: f32[34,2], index: 4, kind: input, shape index: {}]
  %s5 = inlined_call_operand.vmem [shape: f32[2,34], index: 5, kind: input, shape index: {}]
  %s6 = inlined_call_operand.vmem [shape: f32[1,1,32], index: 6, kind: input, shape index: {}]
  %s7 = inlined_call_operand.vmem [shape: f32[1,1,32], index: 7, kind: input, shape index: {}]
  %s8 = inlined_call_operand.vmem [shape: f32[1,1,32], index: 8, kind: input, shape index: {}]
  %s9 = inlined_call_operand.vmem [shape: f32[1,1,32], index: 9, kind: input, shape index: {}]
  %s10 = inlined_call_operand.vmem [shape: f32[1,1,32], index: 10, kind: input, shape index: {}]
  %s11 = inlined_call_operand.vmem [shape: f32[1,1,32], index: 11, kind: input, shape index: {}]
  %s12 = inlined_call_operand.vmem [shape: f32[32,32], index: 12, kind: input, shape index: {}]
  %s13 = inlined_call_operand.vmem [shape: f32[32,64], index: 13, kind: input, shape index: {}]
  %s14 = inlined_call_operand.vmem [shape: f32[32,32], index: 14, kind: input, shape index: {}]
  %s15 = inlined_call_operand.vmem [shape: f32[1,32], index: 15, kind: input, shape index: {}]
  %s16 = inlined_call_operand.vmem [shape: f32[32,128], index: 16, kind: input, shape index: {}]
  %s17 = inlined_call_operand.vmem [shape: f32[1,128], index: 17, kind: input, shape index: {}]
  %s18 = inlined_call_operand.vmem [shape: f32[128,32], index: 18, kind: input, shape index: {}]
  %s19 = inlined_call_operand.vmem [shape: f32[1,32], index: 19, kind: input, shape index: {}]
  %s20 = inlined_call_operand.hbm [shape: f32[1,2,32], index: 20, kind: output, shape index: {}]
  %s21 = sld [smem:[#allocation0]]
  $region90: #{tpu_custom_call.1} parent=0
    _
  %s23 = ssub.s32 1, %s21
  %s24 = scalar_select 0, %s23, %s21
  $region1: #{tpu_custom_call.1} parent=0
    #allocation2 [shape = 'u8[1024]{0}', space=vmem, size = 0x400, scoped, tag = 'output window, operand 0, single buffered']
    #allocation3 [shape = 's32[1]{0}', space=sflag, size = 0x4, scoped, tag = 'scoped memory for tpu_custom_call.1']
    %25 = vsyncpa [#allocation3], 0
    // Predicated region
    $region2: #{tpu_custom_call.1} parent=1 // pred_check
      _
    $region3: #{tpu_custom_call.1} parent=1 // pred_check_branch
      %27 = sbr.rel (0) target = $region5
    $region4: #{tpu_custom_call.1} parent=1 // pred_region
      _
    $region5: #{tpu_custom_call.1} parent=1 // pred_fallthru
      _
    // Predicated region
    $region6: #{tpu_custom_call.1} parent=1 // pred_check
      _
    $region7: #{tpu_custom_call.1} parent=1 // pred_check_branch
      %29 = sbr.rel (0) target = $region9
    $region8: #{tpu_custom_call.1} parent=1 // pred_region
      _
    $region9: #{tpu_custom_call.1} parent=1 // pred_fallthru
      _
    // Predicated region
    $region10: #{tpu_custom_call.1} parent=1 // pred_check
      _
    $region11: #{tpu_custom_call.1} parent=1 // pred_check_branch
      %31 = sbr.rel (0) target = $region13
    $region12: #{tpu_custom_call.1} parent=1 // pred_region
      _
    $region13: #{tpu_custom_call.1} parent=1 // pred_fallthru
      _
    // Predicated region
    $region14: #{tpu_custom_call.1} parent=1 // pred_check
      _
    $region15: #{tpu_custom_call.1} parent=1 // pred_check_branch
      %33 = sbr.rel (0) target = $region17
    $region16: #{tpu_custom_call.1} parent=1 // pred_region
      _
    $region17: #{tpu_custom_call.1} parent=1 // pred_fallthru
      _
    // Predicated region
    $region18: #{tpu_custom_call.1} parent=1 // pred_check
      _
    $region19: #{tpu_custom_call.1} parent=1 // pred_check_branch
      %35 = sbr.rel (0) target = $region21
    $region20: #{tpu_custom_call.1} parent=1 // pred_region
      _
    $region21: #{tpu_custom_call.1} parent=1 // pred_fallthru
      _
    // Predicated region
    $region22: #{tpu_custom_call.1} parent=1 // pred_check
      _
    $region23: #{tpu_custom_call.1} parent=1 // pred_check_branch
      %37 = sbr.rel (0) target = $region25
    $region24: #{tpu_custom_call.1} parent=1 // pred_region
      _
    $region25: #{tpu_custom_call.1} parent=1 // pred_fallthru
      _
    // Predicated region
    $region26: #{tpu_custom_call.1} parent=1 // pred_check
      _
    $region27: #{tpu_custom_call.1} parent=1 // pred_check_branch
      %39 = sbr.rel (0) target = $region29
    $region28: #{tpu_custom_call.1} parent=1 // pred_region
      _
    $region29: #{tpu_custom_call.1} parent=1 // pred_fallthru
      _
    // Predicated region
    $region30: #{tpu_custom_call.1} parent=1 // pred_check
      _
    $region31: #{tpu_custom_call.1} parent=1 // pred_check_branch
      %41 = sbr.rel (0) target = $region33
    $region32: #{tpu_custom_call.1} parent=1 // pred_region
      _
    $region33: #{tpu_custom_call.1} parent=1 // pred_fallthru
      _
    // Predicated region
    $region34: #{tpu_custom_call.1} parent=1 // pred_check
      _
    $region35: #{tpu_custom_call.1} parent=1 // pred_check_branch
      %43 = sbr.rel (0) target = $region37
    $region36: #{tpu_custom_call.1} parent=1 // pred_region
      _
    $region37: #{tpu_custom_call.1} parent=1 // pred_fallthru
      _
    // Predicated region
    $region38: #{tpu_custom_call.1} parent=1 // pred_check
      _
    $region39: #{tpu_custom_call.1} parent=1 // pred_check_branch
      %45 = sbr.rel (0) target = $region41
    $region40: #{tpu_custom_call.1} parent=1 // pred_region
      _
    $region41: #{tpu_custom_call.1} parent=1 // pred_fallthru
      _
    // Predicated region
    $region42: #{tpu_custom_call.1} parent=1 // pred_check
      _
    $region43: #{tpu_custom_call.1} parent=1 // pred_check_branch
      %47 = sbr.rel (0) target = $region45
    $region44: #{tpu_custom_call.1} parent=1 // pred_region
      _
    $region45: #{tpu_custom_call.1} parent=1 // pred_fallthru
      _
    // Predicated region
    $region46: #{tpu_custom_call.1} parent=1 // pred_check
      _
    $region47: #{tpu_custom_call.1} parent=1 // pred_check_branch
      %49 = sbr.rel (0) target = $region49
    $region48: #{tpu_custom_call.1} parent=1 // pred_region
      _
    $region49: #{tpu_custom_call.1} parent=1 // pred_fallthru
      _
    // Predicated region
    $region50: #{tpu_custom_call.1} parent=1 // pred_check
      _
    $region51: #{tpu_custom_call.1} parent=1 // pred_check_branch
      %51 = sbr.rel (0) target = $region53
    $region52: #{tpu_custom_call.1} parent=1 // pred_region
      _
    $region53: #{tpu_custom_call.1} parent=1 // pred_fallthru
      _
    // Predicated region
    $region54: #{tpu_custom_call.1} parent=1 // pred_check
      _
    $region55: #{tpu_custom_call.1} parent=1 // pred_check_branch
      %53 = sbr.rel (0) target = $region57
    $region56: #{tpu_custom_call.1} parent=1 // pred_region
      _
    $region57: #{tpu_custom_call.1} parent=1 // pred_fallthru
      _
    // Predicated region
    $region58: #{tpu_custom_call.1} parent=1 // pred_check
      _
    $region59: #{tpu_custom_call.1} parent=1 // pred_check_branch
      %55 = sbr.rel (0) target = $region61
    $region60: #{tpu_custom_call.1} parent=1 // pred_region
      _
    $region61: #{tpu_custom_call.1} parent=1 // pred_fallthru
      _
    // Predicated region
    $region62: #{tpu_custom_call.1} parent=1 // pred_check
      _
    $region63: #{tpu_custom_call.1} parent=1 // pred_check_branch
      %57 = sbr.rel (0) target = $region65
    $region64: #{tpu_custom_call.1} parent=1 // pred_region
      _
    $region65: #{tpu_custom_call.1} parent=1 // pred_fallthru
      _
    // Predicated region
    $region66: #{tpu_custom_call.1} parent=1 // pred_check
      _
    $region67: #{tpu_custom_call.1} parent=1 // pred_check_branch
      %59 = sbr.rel (0) target = $region69
    $region68: #{tpu_custom_call.1} parent=1 // pred_region
      _
    $region69: #{tpu_custom_call.1} parent=1 // pred_fallthru
      _
    // Predicated region
    $region70: #{tpu_custom_call.1} parent=1 // pred_check
      _
    $region71: #{tpu_custom_call.1} parent=1 // pred_check_branch
      %61 = sbr.rel (0) target = $region73
    $region72: #{tpu_custom_call.1} parent=1 // pred_region
      _
    $region73: #{tpu_custom_call.1} parent=1 // pred_fallthru
      _
    // Predicated region
    $region74: #{tpu_custom_call.1} parent=1 // pred_check
      _
    $region75: #{tpu_custom_call.1} parent=1 // pred_check_branch
      %63 = sbr.rel (0) target = $region77
    $region76: #{tpu_custom_call.1} parent=1 // pred_region
      _
    $region77: #{tpu_custom_call.1} parent=1 // pred_fallthru
      _
    // Predicated region
    $region78: #{tpu_custom_call.1} parent=1 // pred_check
      _
    $region79: #{tpu_custom_call.1} parent=1 // pred_check_branch
      %65 = sbr.rel (0) target = $region81
    $region80: #{tpu_custom_call.1} parent=1 // pred_region
      _
    $region81: #{tpu_custom_call.1} parent=1 // pred_fallthru
      _
    %v66 = vld [vmem:[%s0] sm:$0xff]
    %v67 = vld [vmem:[%s0 + $0x8] sm:$0xff]
    %v68 = vld [vmem:[%s0 + $0x10] sm:$0xff]
    %v69 = vld [vmem:[%s0 + $0x18] sm:$0xff]
    %v70 = vld [vmem:[%s0 + $0x20] sm:$0x3]
    %vm71 = vcmask 261120
    %v72 = vsel %vm71, %v66, 0.0
    %73 = vadd.xlane.f32.xlu0 %v72
    %v74 = vpop.xlane.xlu0 %73
    %v75 = vsel %vm71, %v67, 0.0
    %76 = vadd.xlane.f32.xlu0 %v75
    %v77 = vpop.xlane.xlu0 %76
    %v78 = vsel %vm71, %v68, 0.0
    %79 = vadd.xlane.f32.xlu0 %v78
    %v80 = vpop.xlane.xlu0 %79
    %v81 = vsel %vm71, %v69, 0.0
    %82 = vadd.xlane.f32.xlu0 %v81
    %v83 = vpop.xlane.xlu0 %82
    %vm84 = vcmask 254976
    %v85 = vsel %vm84, %v70, 0.0
    %86 = vadd.xlane.f32.xlu0 %v85
    %v87 = vpop.xlane.xlu0 %86
    %v88 = vrcp.pop 32.0
    %v89 = vmul.f32 %v74, %v88
    %v90 = vmul.f32 %v77, %v88
    %v91 = vmul.f32 %v80, %v88
    %v92 = vmul.f32 %v83, %v88
    %v93 = vmul.f32 %v87, %v88
    %v94 = vsub.f32 %v66, %v89
    %v95 = vsub.f32 %v67, %v90
    %v96 = vsub.f32 %v68, %v91
    %v97 = vsub.f32 %v69, %v92
    %v98 = vsub.f32 %v70, %v93
    %v99 = vmul.f32 %v94, %v94
    %v100 = vmul.f32 %v95, %v95
    %v101 = vmul.f32 %v96, %v96
    %v102 = vmul.f32 %v97, %v97
    %v103 = vmul.f32 %v98, %v98
    %v104 = vsel %vm71, %v99, 0.0
    %105 = vadd.xlane.f32.xlu0 %v104
    %v106 = vpop.xlane.xlu0 %105
    %v107 = vsel %vm71, %v100, 0.0
    %108 = vadd.xlane.f32.xlu0 %v107
    %v109 = vpop.xlane.xlu0 %108
    %v110 = vsel %vm71, %v101, 0.0
    %111 = vadd.xlane.f32.xlu0 %v110
    %v112 = vpop.xlane.xlu0 %111
    %v113 = vsel %vm71, %v102, 0.0
    %114 = vadd.xlane.f32.xlu0 %v113
    %v115 = vpop.xlane.xlu0 %114
    %v116 = vsel %vm84, %v103, 0.0
    %117 = vadd.xlane.f32.xlu0 %v116
    %v118 = vpop.xlane.xlu0 %117
    %v119 = vmul.f32 %v106, %v88
    %v120 = vmul.f32 %v109, %v88
    %v121 = vmul.f32 %v112, %v88
    %v122 = vmul.f32 %v115, %v88
    %v123 = vmul.f32 %v118, %v88
    %v124 = vadd.f32 %v119, 1e-05
    %v125 = vadd.f32 %v120, 1e-05
    %v126 = vadd.f32 %v121, 1e-05
    %v127 = vadd.f32 %v122, 1e-05
    %v128 = vadd.f32 %v123, 1e-05
    %v129 = vrsqrt.pop %v124
    %v130 = vrsqrt.pop %v125
    %v131 = vrsqrt.pop %v126
    %v132 = vrsqrt.pop %v127
    %v133 = vrsqrt.pop %v128
    %v134 = vmul.f32 %v94, %v129
    %v135 = vmul.f32 %v95, %v130
    %v136 = vmul.f32 %v96, %v131
    %v137 = vmul.f32 %v97, %v132
    %v138 = vmul.f32 %v98, %v133
    %v139 = vld [vmem:[%s6] sm:$0x1]
    %v141 = vlaneseq
    %v142 = vshrl.u32 %v141, 7
    %v143 = vsub.s32 0, %v142
    %v144 = vrot.slane %v139, %v143
    %v146 = vmul.f32 %v134, %v144
    %v147 = vmul.f32 %v135, %v144
    %v148 = vmul.f32 %v136, %v144
    %v149 = vmul.f32 %v137, %v144
    %v150 = vmul.f32 %v138, %v144
    %v151 = vld [vmem:[%s7] sm:$0x1]
    %v153 = vlaneseq
    %v154 = vshrl.u32 %v153, 7
    %v155 = vsub.s32 0, %v154
    %v156 = vrot.slane %v151, %v155
    %v158 = vadd.f32 %v146, %v156
    %v159 = vadd.f32 %v147, %v156
    %v160 = vadd.f32 %v148, %v156
    %v161 = vadd.f32 %v149, %v156
    %v162 = vadd.f32 %v150, %v156
    %v163 = vld [vmem:[%s13] sm:$0xff]
    %v164 = vld [vmem:[%s13 + $0x8] sm:$0xff]
    %v165 = vld [vmem:[%s13 + $0x10] sm:$0xff]
    %v166 = vld [vmem:[%s13 + $0x18] sm:$0xff]
    %v168 = vsel %vm71, %v158, 0
    %v171 = vsel %vm71, %v159, 0
    %v174 = vsel %vm71, %v160, 0
    %v177 = vsel %vm71, %v161, 0
    %v180 = vsel %vm71, %v162, 0
    %182 = vmatprep.subr.mxu0 0.0
    %183 = vmatpush1.msra.mxu0 0.0
    %184 = vmatprep.subr.mxu0 0.0
    %185 = vmatpush1.msra.mxu0 0.0
    %186 = vmatprep.subr.mxu0 0.0
    %187 = vmatpush1.msra.mxu0 0.0
    %188 = vmatprep.subr.mxu0 0.0
    %189 = vmatpush1.msra.mxu0 0.0
    %190 = vmatprep.subr.mxu0 0.0
    %191 = vmatpush1.msra.mxu0 0.0
    %192 = vmatprep.subr.mxu0 0.0
    %193 = vmatpush1.msra.mxu0 0.0
    %194 = vmatprep.subr.mxu0 0.0
    %195 = vmatpush1.msra.mxu0 0.0
    %196 = vmatprep.subr.mxu0 0.0
    %197 = vmatpush1.msra.mxu0 0.0
    %198 = vmatprep.subr.mxu0 0.0
    %199 = vmatpush1.msra.mxu0 0.0
    %200 = vmatprep.subr.mxu0 0.0
    %201 = vmatpush1.msra.mxu0 0.0
    %202 = vmatprep.subr.mxu0 0.0
    %203 = vmatpush1.msra.mxu0 0.0
    %204 = vmatprep.subr.mxu0 0.0
    %205 = vmatpush1.msra.mxu0 0.0
    %206 = vmatprep.subr.mxu0 0.0
    %207 = vmatpush1.msra.mxu0 %v166
    %208 = vmatprep.subr.mxu0 0.0
    %209 = vmatpush1.msra.mxu0 %v165
    %210 = vmatprep.subr.mxu0 0.0
    %211 = vmatpush1.msra.mxu0 %v164
    %212 = vmatprep.subr.mxu0 0.0
    %213 = vmatpush1.msra.mxu0 %v163
    %214 = vmatprep.subr.mxu0 0.0
    %215 = vmatpush2.msra.mxu0 0.0
    %216 = vmatprep.subr.mxu0 0.0
    %217 = vmatpush2.msra.mxu0 0.0
    %218 = vmatprep.subr.mxu0 0.0
    %219 = vmatpush2.msra.mxu0 0.0
    %220 = vmatprep.subr.mxu0 0.0
    %221 = vmatpush2.msra.mxu0 0.0
    %222 = vmatprep.subr.mxu0 0.0
    %223 = vmatpush2.msra.mxu0 0.0
    %224 = vmatprep.subr.mxu0 0.0
    %225 = vmatpush2.msra.mxu0 0.0
    %226 = vmatprep.subr.mxu0 0.0
    %227 = vmatpush2.msra.mxu0 0.0
    %228 = vmatprep.subr.mxu0 0.0
    %229 = vmatpush2.msra.mxu0 0.0
    %230 = vmatprep.subr.mxu0 0.0
    %231 = vmatpush2.msra.mxu0 0.0
    %232 = vmatprep.subr.mxu0 0.0
    %233 = vmatpush2.msra.mxu0 0.0
    %234 = vmatprep.subr.mxu0 0.0
    %235 = vmatpush2.msra.mxu0 0.0
    %236 = vmatprep.subr.mxu0 0.0
    %237 = vmatpush2.msra.mxu0 0.0
    %238 = vmatprep.subr.mxu0 0.0
    %239 = vmatpush2.msra.mxu0 0.0
    %240 = vmatprep.subr.mxu0 0.0
    %241 = vmatpush2.msra.mxu0 0.0
    %242 = vmatprep.subr.mxu0 0.0
    %243 = vmatpush2.msra.mxu0 0.0
    %244 = vmatprep.subr.mxu0 0.0
    %245 = vmatpush2.msra.mxu0 0.0
    %246 = vmatprep.mubr.f32.mxu0 0.0
    %247 = vmatmul.mubr.f32.gmra.mxu0 %v168
    %v248 = vpop.f32.mrf.mxu0
    %v249 = vadd.f32 0.0, %v248
    %v250 = vpop.f32.mrf.mxu0
    %251 = vmatprep.mubr.f32.mxu0 0.0
    %252 = vmatmul.mubr.f32.gmra.mxu0 %v171
    %v253 = vpop.f32.mrf.mxu0
    %v254 = vadd.f32 0.0, %v253
    %v255 = vpop.f32.mrf.mxu0
    %256 = vmatprep.mubr.f32.mxu0 0.0
    %257 = vmatmul.mubr.f32.gmra.mxu0 %v174
    %v258 = vpop.f32.mrf.mxu0
    %v259 = vadd.f32 0.0, %v258
    %v260 = vpop.f32.mrf.mxu0
    %261 = vmatprep.mubr.f32.mxu0 0.0
    %262 = vmatmul.mubr.f32.gmra.mxu0 %v177
    %v263 = vpop.f32.mrf.mxu0
    %v264 = vadd.f32 0.0, %v263
    %v265 = vpop.f32.mrf.mxu0
    %266 = vmatprep.mubr.f32.mxu0 0.0
    %267 = vmatmul.mubr.f32.gmra.mxu0 %v180
    %v268 = vpop.f32.mrf.mxu0
    %v269 = vadd.f32 0.0, %v268
    %v270 = vpop.f32.mrf.mxu0
    %271 = vdwg.mxu0
    %v272 = vld [vmem:[%s1] sm:$0x3]
    %v273 = vsel %vm84, %v272, 0.0
    %274 = vadd.xlane.f32.xlu0 %v273
    %v275 = vpop.xlane.xlu0 %274
    %v276 = vmul.f32 %v275, %v88
    %v277 = vsub.f32 %v272, %v276
    %v278 = vmul.f32 %v277, %v277
    %v279 = vsel %vm84, %v278, 0.0
    %280 = vadd.xlane.f32.xlu0 %v279
    %v281 = vpop.xlane.xlu0 %280
    %v282 = vmul.f32 %v281, %v88
    %v283 = vadd.f32 %v282, 1e-05
    %v284 = vrsqrt.pop %v283
    %v285 = vmul.f32 %v277, %v284
    %v286 = vmul.f32 %v285, %v144
    %v287 = vadd.f32 %v286, %v156
    %v288 = vld [vmem:[%s12] sm:$0xff]
    %v289 = vld [vmem:[%s12 + $0x8] sm:$0xff]
    %v290 = vld [vmem:[%s12 + $0x10] sm:$0xff]
    %v291 = vld [vmem:[%s12 + $0x18] sm:$0xff]
    %v293 = vsel %vm71, %v287, 0
    %295 = vmatprep.subr.mxu0 0.0
    %296 = vmatpush1.msra.mxu0 0.0
    %297 = vmatprep.subr.mxu0 0.0
    %298 = vmatpush1.msra.mxu0 0.0
    %299 = vmatprep.subr.mxu0 0.0
    %300 = vmatpush1.msra.mxu0 0.0
    %301 = vmatprep.subr.mxu0 0.0
    %302 = vmatpush1.msra.mxu0 0.0
    %303 = vmatprep.subr.mxu0 0.0
    %304 = vmatpush1.msra.mxu0 0.0
    %305 = vmatprep.subr.mxu0 0.0
    %306 = vmatpush1.msra.mxu0 0.0
    %307 = vmatprep.subr.mxu0 0.0
    %308 = vmatpush1.msra.mxu0 0.0
    %309 = vmatprep.subr.mxu0 0.0
    %310 = vmatpush1.msra.mxu0 0.0
    %311 = vmatprep.subr.mxu0 0.0
    %312 = vmatpush1.msra.mxu0 0.0
    %313 = vmatprep.subr.mxu0 0.0
    %314 = vmatpush1.msra.mxu0 0.0
    %315 = vmatprep.subr.mxu0 0.0
    %316 = vmatpush1.msra.mxu0 0.0
    %317 = vmatprep.subr.mxu0 0.0
    %318 = vmatpush1.msra.mxu0 0.0
    %319 = vmatprep.subr.mxu0 0.0
    %320 = vmatpush1.msra.mxu0 %v291
    %321 = vmatprep.subr.mxu0 0.0
    %322 = vmatpush1.msra.mxu0 %v290
    %323 = vmatprep.subr.mxu0 0.0
    %324 = vmatpush1.msra.mxu0 %v289
    %325 = vmatprep.subr.mxu0 0.0
    %326 = vmatpush1.msra.mxu0 %v288
    %327 = vmatprep.subr.mxu0 0.0
    %328 = vmatpush2.msra.mxu0 0.0
    %329 = vmatprep.subr.mxu0 0.0
    %330 = vmatpush2.msra.mxu0 0.0
    %331 = vmatprep.subr.mxu0 0.0
    %332 = vmatpush2.msra.mxu0 0.0
    %333 = vmatprep.subr.mxu0 0.0
    %334 = vmatpush2.msra.mxu0 0.0
    %335 = vmatprep.subr.mxu0 0.0
    %336 = vmatpush2.msra.mxu0 0.0
    %337 = vmatprep.subr.mxu0 0.0
    %338 = vmatpush2.msra.mxu0 0.0
    %339 = vmatprep.subr.mxu0 0.0
    %340 = vmatpush2.msra.mxu0 0.0
    %341 = vmatprep.subr.mxu0 0.0
    %342 = vmatpush2.msra.mxu0 0.0
    %343 = vmatprep.subr.mxu0 0.0
    %344 = vmatpush2.msra.mxu0 0.0
    %345 = vmatprep.subr.mxu0 0.0
    %346 = vmatpush2.msra.mxu0 0.0
    %347 = vmatprep.subr.mxu0 0.0
    %348 = vmatpush2.msra.mxu0 0.0
    %349 = vmatprep.subr.mxu0 0.0
    %350 = vmatpush2.msra.mxu0 0.0
    %351 = vmatprep.subr.mxu0 0.0
    %352 = vmatpush2.msra.mxu0 0.0
    %353 = vmatprep.subr.mxu0 0.0
    %354 = vmatpush2.msra.mxu0 0.0
    %355 = vmatprep.subr.mxu0 0.0
    %356 = vmatpush2.msra.mxu0 0.0
    %357 = vmatprep.subr.mxu0 0.0
    %358 = vmatpush2.msra.mxu0 0.0
    %359 = vmatprep.mubr.f32.mxu0 0.0
    %360 = vmatmul.mubr.f32.gmra.mxu0 %v293
    %v361 = vpop.f32.mrf.mxu0
    %v362 = vadd.f32 0.0, %v361
    %v363 = vpop.f32.mrf.mxu0
    %364 = vdwg.mxu0
    %v365 = vmul.f32 %v362, 0.35355338
    %v366 = vld [vmem:[%s4] sm:$0xff]
    %v367 = vld [vmem:[%s4 + $0x8] sm:$0xff]
    %v368 = vld [vmem:[%s4 + $0x10] sm:$0xff]
    %v369 = vld [vmem:[%s4 + $0x18] sm:$0xff]
    %v370 = vld [vmem:[%s4 + $0x20] sm:$0x3]
    %vm371 = vcmask 15360
    %v373 = vsel %vm371, %v366, 0
    %v376 = vsel %vm371, %v367, 0
    %v379 = vsel %vm371, %v368, 0
    %v382 = vsel %vm371, %v369, 0
    %v385 = vsel %vm371, %v370, 0
    %vm387 = vcmask 1041408
    %v389 = vsel %vm387, %v365, 0
    %391 = vmatprep.subr.mxu0 0.0
    %392 = vmatpush1.msra.mxu0 0.0
    %393 = vmatprep.subr.mxu0 0.0
    %394 = vmatpush1.msra.mxu0 0.0
    %395 = vmatprep.subr.mxu0 0.0
    %396 = vmatpush1.msra.mxu0 0.0
    %397 = vmatprep.subr.mxu0 0.0
    %398 = vmatpush1.msra.mxu0 0.0
    %399 = vmatprep.subr.mxu0 0.0
    %400 = vmatpush1.msra.mxu0 0.0
    %401 = vmatprep.subr.mxu0 0.0
    %402 = vmatpush1.msra.mxu0 0.0
    %403 = vmatprep.subr.mxu0 0.0
    %404 = vmatpush1.msra.mxu0 0.0
    %405 = vmatprep.subr.mxu0 0.0
    %406 = vmatpush1.msra.mxu0 0.0
    %407 = vmatprep.subr.mxu0 0.0
    %408 = vmatpush1.msra.mxu0 0.0
    %409 = vmatprep.subr.mxu0 0.0
    %410 = vmatpush1.msra.mxu0 0.0
    %411 = vmatprep.subr.mxu0 0.0
    %412 = vmatpush1.msra.mxu0 0.0
    %413 = vmatprep.subr.mxu0 0.0
    %414 = vmatpush1.msra.mxu0 0.0
    %415 = vmatprep.subr.mxu0 0.0
    %416 = vmatpush1.msra.mxu0 0.0
    %417 = vmatprep.subr.mxu0 0.0
    %418 = vmatpush1.msra.mxu0 0.0
    %419 = vmatprep.subr.mxu0 0.0
    %420 = vmatpush1.msra.mxu0 0.0
    %421 = vmatprep.subr.mxu0 0.0
    %422 = vmatpush1.msra.mxu0 %v389
    %423 = vmatprep.subr.mxu0 0.0
    %424 = vmatpush2.msra.mxu0 0.0
    %425 = vmatprep.subr.mxu0 0.0
    %426 = vmatpush2.msra.mxu0 0.0
    %427 = vmatprep.subr.mxu0 0.0
    %428 = vmatpush2.msra.mxu0 0.0
    %429 = vmatprep.subr.mxu0 0.0
    %430 = vmatpush2.msra.mxu0 0.0
    %431 = vmatprep.subr.mxu0 0.0
    %432 = vmatpush2.msra.mxu0 0.0
    %433 = vmatprep.subr.mxu0 0.0
    %434 = vmatpush2.msra.mxu0 0.0
    %435 = vmatprep.subr.mxu0 0.0
    %436 = vmatpush2.msra.mxu0 0.0
    %437 = vmatprep.subr.mxu0 0.0
    %438 = vmatpush2.msra.mxu0 0.0
    %439 = vmatprep.subr.mxu0 0.0
    %440 = vmatpush2.msra.mxu0 0.0
    %441 = vmatprep.subr.mxu0 0.0
    %442 = vmatpush2.msra.mxu0 0.0
    %443 = vmatprep.subr.mxu0 0.0
    %444 = vmatpush2.msra.mxu0 0.0
    %445 = vmatprep.subr.mxu0 0.0
    %446 = vmatpush2.msra.mxu0 0.0
    %447 = vmatprep.subr.mxu0 0.0
    %448 = vmatpush2.msra.mxu0 0.0
    %449 = vmatprep.subr.mxu0 0.0
    %450 = vmatpush2.msra.mxu0 0.0
    %451 = vmatprep.subr.mxu0 0.0
    %452 = vmatpush2.msra.mxu0 0.0
    %453 = vmatprep.subr.mxu0 0.0
    %454 = vmatpush2.msra.mxu0 0.0
    %455 = vmatprep.mubr.f32.mxu0 0.0
    %456 = vmatmul.mubr.f32.gmra.mxu0 %v373
    %v457 = vpop.f32.mrf.mxu0
    %v458 = vadd.f32 0.0, %v457
    %v459 = vpop.f32.mrf.mxu0
    %460 = vmatprep.mubr.f32.mxu0 0.0
    %461 = vmatmul.mubr.f32.gmra.mxu0 %v376
    %v462 = vpop.f32.mrf.mxu0
    %v463 = vadd.f32 0.0, %v462
    %v464 = vpop.f32.mrf.mxu0
    %465 = vmatprep.mubr.f32.mxu0 0.0
    %466 = vmatmul.mubr.f32.gmra.mxu0 %v379
    %v467 = vpop.f32.mrf.mxu0
    %v468 = vadd.f32 0.0, %v467
    %v469 = vpop.f32.mrf.mxu0
    %470 = vmatprep.mubr.f32.mxu0 0.0
    %471 = vmatmul.mubr.f32.gmra.mxu0 %v382
    %v472 = vpop.f32.mrf.mxu0
    %v473 = vadd.f32 0.0, %v472
    %v474 = vpop.f32.mrf.mxu0
    %475 = vmatprep.mubr.f32.mxu0 0.0
    %476 = vmatmul.mubr.f32.gmra.mxu0 %v385
    %v477 = vpop.f32.mrf.mxu0
    %v478 = vadd.f32 0.0, %v477
    %v479 = vpop.f32.mrf.mxu0
    %480 = vdwg.mxu0
    %v481 = vmul.f32 %v249, %v458
    %v482 = vmul.f32 %v254, %v463
    %v483 = vmul.f32 %v259, %v468
    %v484 = vmul.f32 %v264, %v473
    %v485 = vmul.f32 %v269, %v478
    %v486 = vld [vmem:[%s2] sm:$0xff]
    %v487 = vld [vmem:[%s2 + $0x8] sm:$0xff]
    %v488 = vld [vmem:[%s2 + $0x10] sm:$0xff]
    %v489 = vld [vmem:[%s2 + $0x18] sm:$0xff]
    %v491 = vsel %vm71, %v481, 0
    %v494 = vsel %vm71, %v482, 0
    %v497 = vsel %vm71, %v483, 0
    %v500 = vsel %vm71, %v484, 0
    %v503 = vsel %vm71, %v485, 0
    %505 = vmatprep.subr.mxu0 0.0
    %506 = vmatpush1.msra.mxu0 0.0
    %507 = vmatprep.subr.mxu0 0.0
    %508 = vmatpush1.msra.mxu0 0.0
    %509 = vmatprep.subr.mxu0 0.0
    %510 = vmatpush1.msra.mxu0 0.0
    %511 = vmatprep.subr.mxu0 0.0
    %512 = vmatpush1.msra.mxu0 0.0
    %513 = vmatprep.subr.mxu0 0.0
    %514 = vmatpush1.msra.mxu0 0.0
    %515 = vmatprep.subr.mxu0 0.0
    %516 = vmatpush1.msra.mxu0 0.0
    %517 = vmatprep.subr.mxu0 0.0
    %518 = vmatpush1.msra.mxu0 0.0
    %519 = vmatprep.subr.mxu0 0.0
    %520 = vmatpush1.msra.mxu0 0.0
    %521 = vmatprep.subr.mxu0 0.0
    %522 = vmatpush1.msra.mxu0 0.0
    %523 = vmatprep.subr.mxu0 0.0
    %524 = vmatpush1.msra.mxu0 0.0
    %525 = vmatprep.subr.mxu0 0.0
    %526 = vmatpush1.msra.mxu0 0.0
    %527 = vmatprep.subr.mxu0 0.0
    %528 = vmatpush1.msra.mxu0 0.0
    %529 = vmatprep.subr.mxu0 0.0
    %530 = vmatpush1.msra.mxu0 %v489
    %531 = vmatprep.subr.mxu0 0.0
    %532 = vmatpush1.msra.mxu0 %v488
    %533 = vmatprep.subr.mxu0 0.0
    %534 = vmatpush1.msra.mxu0 %v487
    %535 = vmatprep.subr.mxu0 0.0
    %536 = vmatpush1.msra.mxu0 %v486
    %537 = vmatprep.subr.mxu0 0.0
    %538 = vmatpush2.msra.mxu0 0.0
    %539 = vmatprep.subr.mxu0 0.0
    %540 = vmatpush2.msra.mxu0 0.0
    %541 = vmatprep.subr.mxu0 0.0
    %542 = vmatpush2.msra.mxu0 0.0
    %543 = vmatprep.subr.mxu0 0.0
    %544 = vmatpush2.msra.mxu0 0.0
    %545 = vmatprep.subr.mxu0 0.0
    %546 = vmatpush2.msra.mxu0 0.0
    %547 = vmatprep.subr.mxu0 0.0
    %548 = vmatpush2.msra.mxu0 0.0
    %549 = vmatprep.subr.mxu0 0.0
    %550 = vmatpush2.msra.mxu0 0.0
    %551 = vmatprep.subr.mxu0 0.0
    %552 = vmatpush2.msra.mxu0 0.0
    %553 = vmatprep.subr.mxu0 0.0
    %554 = vmatpush2.msra.mxu0 0.0
    %555 = vmatprep.subr.mxu0 0.0
    %556 = vmatpush2.msra.mxu0 0.0
    %557 = vmatprep.subr.mxu0 0.0
    %558 = vmatpush2.msra.mxu0 0.0
    %559 = vmatprep.subr.mxu0 0.0
    %560 = vmatpush2.msra.mxu0 0.0
    %561 = vmatprep.subr.mxu0 0.0
    %562 = vmatpush2.msra.mxu0 0.0
    %563 = vmatprep.subr.mxu0 0.0
    %564 = vmatpush2.msra.mxu0 0.0
    %565 = vmatprep.subr.mxu0 0.0
    %566 = vmatpush2.msra.mxu0 0.0
    %567 = vmatprep.subr.mxu0 0.0
    %568 = vmatpush2.msra.mxu0 0.0
    %569 = vmatprep.mubr.f32.mxu0 0.0
    %570 = vmatmul.mubr.f32.gmra.mxu0 %v491
    %v571 = vpop.f32.mrf.mxu0
    %v572 = vadd.f32 0.0, %v571
    %v573 = vpop.f32.mrf.mxu0
    %574 = vmatprep.mubr.f32.mxu0 0.0
    %575 = vmatmul.mubr.f32.gmra.mxu0 %v494
    %v576 = vpop.f32.mrf.mxu0
    %v577 = vadd.f32 0.0, %v576
    %v578 = vpop.f32.mrf.mxu0
    %579 = vmatprep.mubr.f32.mxu0 0.0
    %580 = vmatmul.mubr.f32.gmra.mxu0 %v497
    %v581 = vpop.f32.mrf.mxu0
    %v582 = vadd.f32 0.0, %v581
    %v583 = vpop.f32.mrf.mxu0
    %584 = vmatprep.mubr.f32.mxu0 0.0
    %585 = vmatmul.mubr.f32.gmra.mxu0 %v500
    %v586 = vpop.f32.mrf.mxu0
    %v587 = vadd.f32 0.0, %v586
    %v588 = vpop.f32.mrf.mxu0
    %589 = vmatprep.mubr.f32.mxu0 0.0
    %590 = vmatmul.mubr.f32.gmra.mxu0 %v503
    %v591 = vpop.f32.mrf.mxu0
    %v592 = vadd.f32 0.0, %v591
    %v593 = vpop.f32.mrf.mxu0
    %594 = vdwg.mxu0
    %595 = vset.pattern.permute.xlu0 0
    %596 = vperm.xlu0 %595, %v366
    %v597 = vpop.permute.xlu0 %596
    %599 = vset.pattern.permute.xlu0 0
    %600 = vperm.xlu0 %599, %v367
    %v601 = vpop.permute.xlu0 %600
    %603 = vset.pattern.permute.xlu0 0
    %604 = vperm.xlu0 %603, %v368
    %v605 = vpop.permute.xlu0 %604
    %607 = vset.pattern.permute.xlu0 0
    %608 = vperm.xlu0 %607, %v369
    %v609 = vpop.permute.xlu0 %608
    %611 = vset.pattern.permute.xlu0 0
    %612 = vperm.xlu0 %611, %v370
    %v613 = vpop.permute.xlu0 %612
    %v615 = vmul.f32 %v572, %v597
    %v616 = vmul.f32 %v577, %v601
    %v617 = vmul.f32 %v582, %v605
    %v618 = vmul.f32 %v587, %v609
    %v619 = vmul.f32 %v592, %v613
    %v620 = vsub.f32 1.0, %v366
    %v621 = vsub.f32 1.0, %v367
    %v622 = vsub.f32 1.0, %v368
    %v623 = vsub.f32 1.0, %v369
    %v624 = vsub.f32 1.0, %v370
    %v625 = vmul.f32 %v620, -1e+30
    %v626 = vmul.f32 %v621, -1e+30
    %v627 = vmul.f32 %v622, -1e+30
    %v628 = vmul.f32 %v623, -1e+30
    %v629 = vmul.f32 %v624, -1e+30
    %631 = vset.pattern.permute.xlu0 0
    %632 = vperm.xlu0 %631, %v625
    %v633 = vpop.permute.xlu0 %632
    %636 = vset.pattern.permute.xlu0 0
    %637 = vperm.xlu0 %636, %v626
    %v638 = vpop.permute.xlu0 %637
    %641 = vset.pattern.permute.xlu0 0
    %642 = vperm.xlu0 %641, %v627
    %v643 = vpop.permute.xlu0 %642
    %646 = vset.pattern.permute.xlu0 0
    %647 = vperm.xlu0 %646, %v628
    %v648 = vpop.permute.xlu0 %647
    %651 = vset.pattern.permute.xlu0 0
    %652 = vperm.xlu0 %651, %v629
    %v653 = vpop.permute.xlu0 %652
    %v655 = vadd.f32 %v615, %v633
    %v656 = vadd.f32 %v616, %v638
    %v657 = vadd.f32 %v617, %v643
    %v658 = vadd.f32 %v618, %v648
    %v659 = vadd.f32 %v619, %v653
    %vm660 = vcmask 31744
    %v661 = vsel %vm660, %v655, -inf
    %v662 = vsel %vm660, %v656, -inf
    %v663 = vsel %vm660, %v657, -inf
    %v664 = vsel %vm660, %v658, -inf
    %vm665 = vcmask 25600
    %v666 = vsel %vm665, %v659, -inf
    %v667 = vmax.f32 %v661, %v666
    %v668 = vmax.f32 %v667, %v662
    %v669 = vmax.f32 %v663, %v664
    %v670 = vmax.f32 %v668, %v669
    %v671 = vrot.slane %v670, 4
    %v672 = vmax.f32 %v670, %v671
    %v673 = vrot.slane %v672, 2
    %v674 = vmax.f32 %v672, %v673
    %v675 = vrot.slane %v674, 1
    %v676 = vmax.f32 %v674, %v675
    %v677 = vmul.f32 %v597, %v676
    %v678 = vmul.f32 %v601, %v676
    %v679 = vmul.f32 %v605, %v676
    %v680 = vmul.f32 %v609, %v676
    %v681 = vmul.f32 %v613, %v676
    %v682 = vadd.f32 %v677, 0.0
    %v683 = vadd.f32 %v678, 0.0
    %v684 = vadd.f32 %v679, 0.0
    %v685 = vadd.f32 %v680, 0.0
    %v686 = vadd.f32 %v681, 0.0
    %687 = vset.pattern.permute.xlu0 1
    %688 = vperm.xlu0 %687, %v366
    %v689 = vpop.permute.xlu0 %688
    %691 = vset.pattern.permute.xlu0 1
    %692 = vperm.xlu0 %691, %v367
    %v693 = vpop.permute.xlu0 %692
    %695 = vset.pattern.permute.xlu0 1
    %696 = vperm.xlu0 %695, %v368
    %v697 = vpop.permute.xlu0 %696
    %699 = vset.pattern.permute.xlu0 1
    %700 = vperm.xlu0 %699, %v369
    %v701 = vpop.permute.xlu0 %700
    %703 = vset.pattern.permute.xlu0 1
    %704 = vperm.xlu0 %703, %v370
    %v705 = vpop.permute.xlu0 %704
    %v707 = vmul.f32 %v572, %v689
    %v708 = vmul.f32 %v577, %v693
    %v709 = vmul.f32 %v582, %v697
    %v710 = vmul.f32 %v587, %v701
    %v711 = vmul.f32 %v592, %v705
    %712 = vset.pattern.permute.xlu0 1
    %713 = vperm.xlu0 %712, %v625
    %v714 = vpop.permute.xlu0 %713
    %716 = vset.pattern.permute.xlu0 1
    %717 = vperm.xlu0 %716, %v626
    %v718 = vpop.permute.xlu0 %717
    %720 = vset.pattern.permute.xlu0 1
    %721 = vperm.xlu0 %720, %v627
    %v722 = vpop.permute.xlu0 %721
    %724 = vset.pattern.permute.xlu0 1
    %725 = vperm.xlu0 %724, %v628
    %v726 = vpop.permute.xlu0 %725
    %728 = vset.pattern.permute.xlu0 1
    %729 = vperm.xlu0 %728, %v629
    %v730 = vpop.permute.xlu0 %729
    %v732 = vadd.f32 %v707, %v714
    %v733 = vadd.f32 %v708, %v718
    %v734 = vadd.f32 %v709, %v722
    %v735 = vadd.f32 %v710, %v726
    %v736 = vadd.f32 %v711, %v730
    %v737 = vsel %vm660, %v732, -inf
    %v738 = vsel %vm660, %v733, -inf
    %v739 = vsel %vm660, %v734, -inf
    %v740 = vsel %vm660, %v735, -inf
    %v741 = vsel %vm665, %v736, -inf
    %v742 = vmax.f32 %v737, %v741
    %v743 = vmax.f32 %v742, %v738
    %v744 = vmax.f32 %v739, %v740
    %v745 = vmax.f32 %v743, %v744
    %v746 = vrot.slane %v745, 4
    %v747 = vmax.f32 %v745, %v746
    %v748 = vrot.slane %v747, 2
    %v749 = vmax.f32 %v747, %v748
    %v750 = vrot.slane %v749, 1
    %v751 = vmax.f32 %v749, %v750
    %v752 = vmul.f32 %v689, %v751
    %v753 = vmul.f32 %v693, %v751
    %v754 = vmul.f32 %v697, %v751
    %v755 = vmul.f32 %v701, %v751
    %v756 = vmul.f32 %v705, %v751
    %v757 = vadd.f32 %v682, %v752
    %v758 = vadd.f32 %v683, %v753
    %v759 = vadd.f32 %v684, %v754
    %v760 = vadd.f32 %v685, %v755
    %v761 = vadd.f32 %v686, %v756
    %v762 = vsub.f32 %v572, %v757
    %v763 = vsub.f32 %v577, %v758
    %v764 = vsub.f32 %v582, %v759
    %v765 = vsub.f32 %v587, %v760
    %v766 = vsub.f32 %v592, %v761
    %v767 = vmul.f32 %v762, 1.442695
    %v768 = vpow.pop %v767
    %v769 = vmul.f32 %v763, 1.442695
    %v770 = vpow.pop %v769
    %v771 = vmul.f32 %v764, 1.442695
    %v772 = vpow.pop %v771
    %v773 = vmul.f32 %v765, 1.442695
    %v774 = vpow.pop %v773
    %v775 = vmul.f32 %v766, 1.442695
    %v776 = vpow.pop %v775
    %v777 = vld [vmem:[%s5] sm:$0x3]
    %vm778 = vcmask 277504
    %v780 = vsel %vm778, %v777, 0
    %v783 = vsel %vm387, %v776, 0
    %785 = vmatprep.subr.mxu0 0.0
    %786 = vmatpush1.msra.mxu0 0.0
    %787 = vmatprep.subr.mxu0 0.0
    %788 = vmatpush1.msra.mxu0 0.0
    %789 = vmatprep.subr.mxu0 0.0
    %790 = vmatpush1.msra.mxu0 0.0
    %791 = vmatprep.subr.mxu0 0.0
    %792 = vmatpush1.msra.mxu0 0.0
    %793 = vmatprep.subr.mxu0 0.0
    %794 = vmatpush1.msra.mxu0 0.0
    %795 = vmatprep.subr.mxu0 0.0
    %796 = vmatpush1.msra.mxu0 0.0
    %797 = vmatprep.subr.mxu0 0.0
    %798 = vmatpush1.msra.mxu0 0.0
    %799 = vmatprep.subr.mxu0 0.0
    %800 = vmatpush1.msra.mxu0 0.0
    %801 = vmatprep.subr.mxu0 0.0
    %802 = vmatpush1.msra.mxu0 0.0
    %803 = vmatprep.subr.mxu0 0.0
    %804 = vmatpush1.msra.mxu0 0.0
    %805 = vmatprep.subr.mxu0 0.0
    %806 = vmatpush1.msra.mxu0 0.0
    %807 = vmatprep.subr.mxu0 0.0
    %808 = vmatpush1.msra.mxu0 %v783
    %809 = vmatprep.subr.mxu0 0.0
    %810 = vmatpush1.msra.mxu0 %v774
    %811 = vmatprep.subr.mxu0 0.0
    %812 = vmatpush1.msra.mxu0 %v772
    %813 = vmatprep.subr.mxu0 0.0
    %814 = vmatpush1.msra.mxu0 %v770
    %815 = vmatprep.subr.mxu0 0.0
    %816 = vmatpush1.msra.mxu0 %v768
    %817 = vmatprep.subr.mxu0 0.0
    %818 = vmatpush2.msra.mxu0 0.0
    %819 = vmatprep.subr.mxu0 0.0
    %820 = vmatpush2.msra.mxu0 0.0
    %821 = vmatprep.subr.mxu0 0.0
    %822 = vmatpush2.msra.mxu0 0.0
    %823 = vmatprep.subr.mxu0 0.0
    %824 = vmatpush2.msra.mxu0 0.0
    %825 = vmatprep.subr.mxu0 0.0
    %826 = vmatpush2.msra.mxu0 0.0
    %827 = vmatprep.subr.mxu0 0.0
    %828 = vmatpush2.msra.mxu0 0.0
    %829 = vmatprep.subr.mxu0 0.0
    %830 = vmatpush2.msra.mxu0 0.0
    %831 = vmatprep.subr.mxu0 0.0
    %832 = vmatpush2.msra.mxu0 0.0
    %833 = vmatprep.subr.mxu0 0.0
    %834 = vmatpush2.msra.mxu0 0.0
    %835 = vmatprep.subr.mxu0 0.0
    %836 = vmatpush2.msra.mxu0 0.0
    %837 = vmatprep.subr.mxu0 0.0
    %838 = vmatpush2.msra.mxu0 0.0
    %839 = vmatprep.subr.mxu0 0.0
    %840 = vmatpush2.msra.mxu0 0.0
    %841 = vmatprep.subr.mxu0 0.0
    %842 = vmatpush2.msra.mxu0 0.0
    %843 = vmatprep.subr.mxu0 0.0
    %844 = vmatpush2.msra.mxu0 0.0
    %845 = vmatprep.subr.mxu0 0.0
    %846 = vmatpush2.msra.mxu0 0.0
    %847 = vmatprep.subr.mxu0 0.0
    %848 = vmatpush2.msra.mxu0 0.0
    %849 = vmatprep.mubr.f32.mxu0 0.0
    %850 = vmatmul.mubr.f32.gmra.mxu0 %v780
    %v851 = vpop.f32.mrf.mxu0
    %v852 = vadd.f32 0.0, %v851
    %v853 = vpop.f32.mrf.mxu0
    %854 = vdwg.mxu0
    %v856 = vsel %vm387, %v852, 0
    %858 = vmatprep.subr.mxu0 0.0
    %859 = vmatpush1.msra.mxu0 0.0
    %860 = vmatprep.subr.mxu0 0.0
    %861 = vmatpush1.msra.mxu0 0.0
    %862 = vmatprep.subr.mxu0 0.0
    %863 = vmatpush1.msra.mxu0 0.0
    %864 = vmatprep.subr.mxu0 0.0
    %865 = vmatpush1.msra.mxu0 0.0
    %866 = vmatprep.subr.mxu0 0.0
    %867 = vmatpush1.msra.mxu0 0.0
    %868 = vmatprep.subr.mxu0 0.0
    %869 = vmatpush1.msra.mxu0 0.0
    %870 = vmatprep.subr.mxu0 0.0
    %871 = vmatpush1.msra.mxu0 0.0
    %872 = vmatprep.subr.mxu0 0.0
    %873 = vmatpush1.msra.mxu0 0.0
    %874 = vmatprep.subr.mxu0 0.0
    %875 = vmatpush1.msra.mxu0 0.0
    %876 = vmatprep.subr.mxu0 0.0
    %877 = vmatpush1.msra.mxu0 0.0
    %878 = vmatprep.subr.mxu0 0.0
    %879 = vmatpush1.msra.mxu0 0.0
    %880 = vmatprep.subr.mxu0 0.0
    %881 = vmatpush1.msra.mxu0 0.0
    %882 = vmatprep.subr.mxu0 0.0
    %883 = vmatpush1.msra.mxu0 0.0
    %884 = vmatprep.subr.mxu0 0.0
    %885 = vmatpush1.msra.mxu0 0.0
    %886 = vmatprep.subr.mxu0 0.0
    %887 = vmatpush1.msra.mxu0 0.0
    %888 = vmatprep.subr.mxu0 0.0
    %889 = vmatpush1.msra.mxu0 %v856
    %890 = vmatprep.subr.mxu0 0.0
    %891 = vmatpush2.msra.mxu0 0.0
    %892 = vmatprep.subr.mxu0 0.0
    %893 = vmatpush2.msra.mxu0 0.0
    %894 = vmatprep.subr.mxu0 0.0
    %895 = vmatpush2.msra.mxu0 0.0
    %896 = vmatprep.subr.mxu0 0.0
    %897 = vmatpush2.msra.mxu0 0.0
    %898 = vmatprep.subr.mxu0 0.0
    %899 = vmatpush2.msra.mxu0 0.0
    %900 = vmatprep.subr.mxu0 0.0
    %901 = vmatpush2.msra.mxu0 0.0
    %902 = vmatprep.subr.mxu0 0.0
    %903 = vmatpush2.msra.mxu0 0.0
    %904 = vmatprep.subr.mxu0 0.0
    %905 = vmatpush2.msra.mxu0 0.0
    %906 = vmatprep.subr.mxu0 0.0
    %907 = vmatpush2.msra.mxu0 0.0
    %908 = vmatprep.subr.mxu0 0.0
    %909 = vmatpush2.msra.mxu0 0.0
    %910 = vmatprep.subr.mxu0 0.0
    %911 = vmatpush2.msra.mxu0 0.0
    %912 = vmatprep.subr.mxu0 0.0
    %913 = vmatpush2.msra.mxu0 0.0
    %914 = vmatprep.subr.mxu0 0.0
    %915 = vmatpush2.msra.mxu0 0.0
    %916 = vmatprep.subr.mxu0 0.0
    %917 = vmatpush2.msra.mxu0 0.0
    %918 = vmatprep.subr.mxu0 0.0
    %919 = vmatpush2.msra.mxu0 0.0
    %920 = vmatprep.subr.mxu0 0.0
    %921 = vmatpush2.msra.mxu0 0.0
    %922 = vmatprep.mubr.f32.mxu0 0.0
    %923 = vmatmul.mubr.f32.gmra.mxu0 %v373
    %v924 = vpop.f32.mrf.mxu0
    %v925 = vadd.f32 0.0, %v924
    %v926 = vpop.f32.mrf.mxu0
    %927 = vmatprep.mubr.f32.mxu0 0.0
    %928 = vmatmul.mubr.f32.gmra.mxu0 %v376
    %v929 = vpop.f32.mrf.mxu0
    %v930 = vadd.f32 0.0, %v929
    %v931 = vpop.f32.mrf.mxu0
    %932 = vmatprep.mubr.f32.mxu0 0.0
    %933 = vmatmul.mubr.f32.gmra.mxu0 %v379
    %v934 = vpop.f32.mrf.mxu0
    %v935 = vadd.f32 0.0, %v934
    %v936 = vpop.f32.mrf.mxu0
    %937 = vmatprep.mubr.f32.mxu0 0.0
    %938 = vmatmul.mubr.f32.gmra.mxu0 %v382
    %v939 = vpop.f32.mrf.mxu0
    %v940 = vadd.f32 0.0, %v939
    %v941 = vpop.f32.mrf.mxu0
    %942 = vmatprep.mubr.f32.mxu0 0.0
    %943 = vmatmul.mubr.f32.gmra.mxu0 %v385
    %v944 = vpop.f32.mrf.mxu0
    %v945 = vadd.f32 0.0, %v944
    %v946 = vpop.f32.mrf.mxu0
    %947 = vdwg.mxu0
    %v948 = vrcp.pop %v925
    %v949 = vrcp.pop %v930
    %v950 = vrcp.pop %v935
    %v951 = vrcp.pop %v940
    %v952 = vrcp.pop %v945
    %v953 = vmul.f32 %v768, %v948
    %v954 = vmul.f32 %v770, %v949
    %v955 = vmul.f32 %v772, %v950
    %v956 = vmul.f32 %v774, %v951
    %v957 = vmul.f32 %v776, %v952
    %v958 = vld [vmem:[%s3] sm:$0xf]
    %v960 = vsel %vm660, %v953, 0
    %v963 = vsel %vm660, %v954, 0
    %v966 = vsel %vm660, %v955, 0
    %v969 = vsel %vm660, %v956, 0
    %v972 = vsel %vm660, %v957, 0
    %vm974 = vcmask 1043456
    %v976 = vsel %vm974, %v958, 0
    %978 = vmatprep.subr.mxu0 0.0
    %979 = vmatpush1.msra.mxu0 0.0
    %980 = vmatprep.subr.mxu0 0.0
    %981 = vmatpush1.msra.mxu0 0.0
    %982 = vmatprep.subr.mxu0 0.0
    %983 = vmatpush1.msra.mxu0 0.0
    %984 = vmatprep.subr.mxu0 0.0
    %985 = vmatpush1.msra.mxu0 0.0
    %986 = vmatprep.subr.mxu0 0.0
    %987 = vmatpush1.msra.mxu0 0.0
    %988 = vmatprep.subr.mxu0 0.0
    %989 = vmatpush1.msra.mxu0 0.0
    %990 = vmatprep.subr.mxu0 0.0
    %991 = vmatpush1.msra.mxu0 0.0
    %992 = vmatprep.subr.mxu0 0.0
    %993 = vmatpush1.msra.mxu0 0.0
    %994 = vmatprep.subr.mxu0 0.0
    %995 = vmatpush1.msra.mxu0 0.0
    %996 = vmatprep.subr.mxu0 0.0
    %997 = vmatpush1.msra.mxu0 0.0
    %998 = vmatprep.subr.mxu0 0.0
    %999 = vmatpush1.msra.mxu0 0.0
    %1000 = vmatprep.subr.mxu0 0.0
    %1001 = vmatpush1.msra.mxu0 0.0
    %1002 = vmatprep.subr.mxu0 0.0
    %1003 = vmatpush1.msra.mxu0 0.0
    %1004 = vmatprep.subr.mxu0 0.0
    %1005 = vmatpush1.msra.mxu0 0.0
    %1006 = vmatprep.subr.mxu0 0.0
    %1007 = vmatpush1.msra.mxu0 0.0
    %1008 = vmatprep.subr.mxu0 0.0
    %1009 = vmatpush1.msra.mxu0 %v976
    %1010 = vmatprep.subr.mxu0 0.0
    %1011 = vmatpush2.msra.mxu0 0.0
    %1012 = vmatprep.subr.mxu0 0.0
    %1013 = vmatpush2.msra.mxu0 0.0
    %1014 = vmatprep.subr.mxu0 0.0
    %1015 = vmatpush2.msra.mxu0 0.0
    %1016 = vmatprep.subr.mxu0 0.0
    %1017 = vmatpush2.msra.mxu0 0.0
    %1018 = vmatprep.subr.mxu0 0.0
    %1019 = vmatpush2.msra.mxu0 0.0
    %1020 = vmatprep.subr.mxu0 0.0
    %1021 = vmatpush2.msra.mxu0 0.0
    %1022 = vmatprep.subr.mxu0 0.0
    %1023 = vmatpush2.msra.mxu0 0.0
    %1024 = vmatprep.subr.mxu0 0.0
    %1025 = vmatpush2.msra.mxu0 0.0
    %1026 = vmatprep.subr.mxu0 0.0
    %1027 = vmatpush2.msra.mxu0 0.0
    %1028 = vmatprep.subr.mxu0 0.0
    %1029 = vmatpush2.msra.mxu0 0.0
    %1030 = vmatprep.subr.mxu0 0.0
    %1031 = vmatpush2.msra.mxu0 0.0
    %1032 = vmatprep.subr.mxu0 0.0
    %1033 = vmatpush2.msra.mxu0 0.0
    %1034 = vmatprep.subr.mxu0 0.0
    %1035 = vmatpush2.msra.mxu0 0.0
    %1036 = vmatprep.subr.mxu0 0.0
    %1037 = vmatpush2.msra.mxu0 0.0
    %1038 = vmatprep.subr.mxu0 0.0
    %1039 = vmatpush2.msra.mxu0 0.0
    %1040 = vmatprep.subr.mxu0 0.0
    %1041 = vmatpush2.msra.mxu0 0.0
    %1042 = vmatprep.mubr.f32.mxu0 0.0
    %1043 = vmatmul.mubr.f32.gmra.mxu0 %v960
    %v1044 = vpop.f32.mrf.mxu0
    %v1045 = vadd.f32 0.0, %v1044
    %v1046 = vpop.f32.mrf.mxu0
    %1047 = vmatprep.mubr.f32.mxu0 0.0
    %1048 = vmatmul.mubr.f32.gmra.mxu0 %v963
    %v1049 = vpop.f32.mrf.mxu0
    %v1050 = vadd.f32 0.0, %v1049
    %v1051 = vpop.f32.mrf.mxu0
    %1052 = vmatprep.mubr.f32.mxu0 0.0
    %1053 = vmatmul.mubr.f32.gmra.mxu0 %v966
    %v1054 = vpop.f32.mrf.mxu0
    %v1055 = vadd.f32 0.0, %v1054
    %v1056 = vpop.f32.mrf.mxu0
    %1057 = vmatprep.mubr.f32.mxu0 0.0
    %1058 = vmatmul.mubr.f32.gmra.mxu0 %v969
    %v1059 = vpop.f32.mrf.mxu0
    %v1060 = vadd.f32 0.0, %v1059
    %v1061 = vpop.f32.mrf.mxu0
    %1062 = vmatprep.mubr.f32.mxu0 0.0
    %1063 = vmatmul.mubr.f32.gmra.mxu0 %v972
    %v1064 = vpop.f32.mrf.mxu0
    %v1065 = vadd.f32 0.0, %v1064
    %v1066 = vpop.f32.mrf.mxu0
    %1067 = vdwg.mxu0
    %1073 = vrot.lane.b32.xlu0 %v249, 96
    %v1074 = vpop.permute.xlu0 %1073
    %1075 = vrot.lane.b32.xlu0 %v254, 96
    %v1076 = vpop.permute.xlu0 %1075
    %1077 = vrot.lane.b32.xlu0 %v259, 96
    %v1078 = vpop.permute.xlu0 %1077
    %1079 = vrot.lane.b32.xlu0 %v264, 96
    %v1080 = vpop.permute.xlu0 %1079
    %1081 = vrot.lane.b32.xlu0 %v269, 96
    %v1082 = vpop.permute.xlu0 %1081
    %v1088 = vmul.f32 %v1045, %v1074
    %v1089 = vmul.f32 %v1050, %v1076
    %v1090 = vmul.f32 %v1055, %v1078
    %v1091 = vmul.f32 %v1060, %v1080
    %v1092 = vmul.f32 %v1065, %v1082
    %v1094 = vsel %vm387, %v1092, 0
    %1096 = vmatprep.subr.mxu0 0.0
    %1097 = vmatpush1.msra.mxu0 0.0
    %1098 = vmatprep.subr.mxu0 0.0
    %1099 = vmatpush1.msra.mxu0 0.0
    %1100 = vmatprep.subr.mxu0 0.0
    %1101 = vmatpush1.msra.mxu0 0.0
    %1102 = vmatprep.subr.mxu0 0.0
    %1103 = vmatpush1.msra.mxu0 0.0
    %1104 = vmatprep.subr.mxu0 0.0
    %1105 = vmatpush1.msra.mxu0 0.0
    %1106 = vmatprep.subr.mxu0 0.0
    %1107 = vmatpush1.msra.mxu0 0.0
    %1108 = vmatprep.subr.mxu0 0.0
    %1109 = vmatpush1.msra.mxu0 0.0
    %1110 = vmatprep.subr.mxu0 0.0
    %1111 = vmatpush1.msra.mxu0 0.0
    %1112 = vmatprep.subr.mxu0 0.0
    %1113 = vmatpush1.msra.mxu0 0.0
    %1114 = vmatprep.subr.mxu0 0.0
    %1115 = vmatpush1.msra.mxu0 0.0
    %1116 = vmatprep.subr.mxu0 0.0
    %1117 = vmatpush1.msra.mxu0 0.0
    %1118 = vmatprep.subr.mxu0 0.0
    %1119 = vmatpush1.msra.mxu0 %v1094
    %1120 = vmatprep.subr.mxu0 0.0
    %1121 = vmatpush1.msra.mxu0 %v1091
    %1122 = vmatprep.subr.mxu0 0.0
    %1123 = vmatpush1.msra.mxu0 %v1090
    %1124 = vmatprep.subr.mxu0 0.0
    %1125 = vmatpush1.msra.mxu0 %v1089
    %1126 = vmatprep.subr.mxu0 0.0
    %1127 = vmatpush1.msra.mxu0 %v1088
    %1128 = vmatprep.subr.mxu0 0.0
    %1129 = vmatpush2.msra.mxu0 0.0
    %1130 = vmatprep.subr.mxu0 0.0
    %1131 = vmatpush2.msra.mxu0 0.0
    %1132 = vmatprep.subr.mxu0 0.0
    %1133 = vmatpush2.msra.mxu0 0.0
    %1134 = vmatprep.subr.mxu0 0.0
    %1135 = vmatpush2.msra.mxu0 0.0
    %1136 = vmatprep.subr.mxu0 0.0
    %1137 = vmatpush2.msra.mxu0 0.0
    %1138 = vmatprep.subr.mxu0 0.0
    %1139 = vmatpush2.msra.mxu0 0.0
    %1140 = vmatprep.subr.mxu0 0.0
    %1141 = vmatpush2.msra.mxu0 0.0
    %1142 = vmatprep.subr.mxu0 0.0
    %1143 = vmatpush2.msra.mxu0 0.0
    %1144 = vmatprep.subr.mxu0 0.0
    %1145 = vmatpush2.msra.mxu0 0.0
    %1146 = vmatprep.subr.mxu0 0.0
    %1147 = vmatpush2.msra.mxu0 0.0
    %1148 = vmatprep.subr.mxu0 0.0
    %1149 = vmatpush2.msra.mxu0 0.0
    %1150 = vmatprep.subr.mxu0 0.0
    %1151 = vmatpush2.msra.mxu0 0.0
    %1152 = vmatprep.subr.mxu0 0.0
    %1153 = vmatpush2.msra.mxu0 0.0
    %1154 = vmatprep.subr.mxu0 0.0
    %1155 = vmatpush2.msra.mxu0 0.0
    %1156 = vmatprep.subr.mxu0 0.0
    %1157 = vmatpush2.msra.mxu0 0.0
    %1158 = vmatprep.subr.mxu0 0.0
    %1159 = vmatpush2.msra.mxu0 0.0
    %1160 = vmatprep.mubr.f32.mxu0 0.0
    %1161 = vmatmul.mubr.f32.gmra.mxu0 %v780
    %v1162 = vpop.f32.mrf.mxu0
    %v1163 = vadd.f32 0.0, %v1162
    %v1164 = vpop.f32.mrf.mxu0
    %1165 = vdwg.mxu0
    %v1166 = vld [vmem:[%s14] sm:$0xff]
    %v1167 = vld [vmem:[%s14 + $0x8] sm:$0xff]
    %v1168 = vld [vmem:[%s14 + $0x10] sm:$0xff]
    %v1169 = vld [vmem:[%s14 + $0x18] sm:$0xff]
    %v1170 = vld [vmem:[%s15] sm:$0x1]
    %v1172 = vlaneseq
    %v1173 = vshrl.u32 %v1172, 7
    %v1174 = vsub.s32 0, %v1173
    %v1175 = vrot.slane %v1170, %v1174
    %v1178 = vsel %vm71, %v1163, 0
    %1180 = vmatprep.subr.mxu0 0.0
    %1181 = vmatpush1.msra.mxu0 0.0
    %1182 = vmatprep.subr.mxu0 0.0
    %1183 = vmatpush1.msra.mxu0 0.0
    %1184 = vmatprep.subr.mxu0 0.0
    %1185 = vmatpush1.msra.mxu0 0.0
    %1186 = vmatprep.subr.mxu0 0.0
    %1187 = vmatpush1.msra.mxu0 0.0
    %1188 = vmatprep.subr.mxu0 0.0
    %1189 = vmatpush1.msra.mxu0 0.0
    %1190 = vmatprep.subr.mxu0 0.0
    %1191 = vmatpush1.msra.mxu0 0.0
    %1192 = vmatprep.subr.mxu0 0.0
    %1193 = vmatpush1.msra.mxu0 0.0
    %1194 = vmatprep.subr.mxu0 0.0
    %1195 = vmatpush1.msra.mxu0 0.0
    %1196 = vmatprep.subr.mxu0 0.0
    %1197 = vmatpush1.msra.mxu0 0.0
    %1198 = vmatprep.subr.mxu0 0.0
    %1199 = vmatpush1.msra.mxu0 0.0
    %1200 = vmatprep.subr.mxu0 0.0
    %1201 = vmatpush1.msra.mxu0 0.0
    %1202 = vmatprep.subr.mxu0 0.0
    %1203 = vmatpush1.msra.mxu0 0.0
    %1204 = vmatprep.subr.mxu0 0.0
    %1205 = vmatpush1.msra.mxu0 %v1169
    %1206 = vmatprep.subr.mxu0 0.0
    %1207 = vmatpush1.msra.mxu0 %v1168
    %1208 = vmatprep.subr.mxu0 0.0
    %1209 = vmatpush1.msra.mxu0 %v1167
    %1210 = vmatprep.subr.mxu0 0.0
    %1211 = vmatpush1.msra.mxu0 %v1166
    %1212 = vmatprep.subr.mxu0 0.0
    %1213 = vmatpush2.msra.mxu0 0.0
    %1214 = vmatprep.subr.mxu0 0.0
    %1215 = vmatpush2.msra.mxu0 0.0
    %1216 = vmatprep.subr.mxu0 0.0
    %1217 = vmatpush2.msra.mxu0 0.0
    %1218 = vmatprep.subr.mxu0 0.0
    %1219 = vmatpush2.msra.mxu0 0.0
    %1220 = vmatprep.subr.mxu0 0.0
    %1221 = vmatpush2.msra.mxu0 0.0
    %1222 = vmatprep.subr.mxu0 0.0
    %1223 = vmatpush2.msra.mxu0 0.0
    %1224 = vmatprep.subr.mxu0 0.0
    %1225 = vmatpush2.msra.mxu0 0.0
    %1226 = vmatprep.subr.mxu0 0.0
    %1227 = vmatpush2.msra.mxu0 0.0
    %1228 = vmatprep.subr.mxu0 0.0
    %1229 = vmatpush2.msra.mxu0 0.0
    %1230 = vmatprep.subr.mxu0 0.0
    %1231 = vmatpush2.msra.mxu0 0.0
    %1232 = vmatprep.subr.mxu0 0.0
    %1233 = vmatpush2.msra.mxu0 0.0
    %1234 = vmatprep.subr.mxu0 0.0
    %1235 = vmatpush2.msra.mxu0 0.0
    %1236 = vmatprep.subr.mxu0 0.0
    %1237 = vmatpush2.msra.mxu0 0.0
    %1238 = vmatprep.subr.mxu0 0.0
    %1239 = vmatpush2.msra.mxu0 0.0
    %1240 = vmatprep.subr.mxu0 0.0
    %1241 = vmatpush2.msra.mxu0 0.0
    %1242 = vmatprep.subr.mxu0 0.0
    %1243 = vmatpush2.msra.mxu0 0.0
    %1244 = vmatprep.mubr.f32.mxu0 0.0
    %1245 = vmatmul.mubr.f32.gmra.mxu0 %v1178
    %v1246 = vpop.f32.mrf.mxu0
    %v1247 = vadd.f32 %v1175, %v1246
    %v1248 = vpop.f32.mrf.mxu0
    %1249 = vdwg.mxu0
    %v1250 = vld [vmem:[%s8] sm:$0x1]
    %v1252 = vlaneseq
    %v1253 = vshrl.u32 %v1252, 7
    %v1254 = vsub.s32 0, %v1253
    %v1255 = vrot.slane %v1250, %v1254
    %v1257 = vmul.f32 %v1255, %v1247
    %v1258 = vadd.f32 %v272, %v1257
    %v1259 = vsel %vm84, %v1258, 0.0
    %1260 = vadd.xlane.f32.xlu0 %v1259
    %v1261 = vpop.xlane.xlu0 %1260
    %v1262 = vmul.f32 %v1261, %v88
    %v1263 = vsub.f32 %v1258, %v1262
    %v1264 = vmul.f32 %v1263, %v1263
    %v1265 = vsel %vm84, %v1264, 0.0
    %1266 = vadd.xlane.f32.xlu0 %v1265
    %v1267 = vpop.xlane.xlu0 %1266
    %v1268 = vmul.f32 %v1267, %v88
    %v1269 = vadd.f32 %v1268, 1e-05
    %v1270 = vrsqrt.pop %v1269
    %v1271 = vmul.f32 %v1263, %v1270
    %v1272 = vld [vmem:[%s9] sm:$0x1]
    %v1274 = vlaneseq
    %v1275 = vshrl.u32 %v1274, 7
    %v1276 = vsub.s32 0, %v1275
    %v1277 = vrot.slane %v1272, %v1276
    %v1279 = vmul.f32 %v1271, %v1277
    %v1280 = vld [vmem:[%s10] sm:$0x1]
    %v1282 = vlaneseq
    %v1283 = vshrl.u32 %v1282, 7
    %v1284 = vsub.s32 0, %v1283
    %v1285 = vrot.slane %v1280, %v1284
    %v1287 = vadd.f32 %v1279, %v1285
    %v1288 = vld [vmem:[%s16] sm:$0xff]
    %v1289 = vld [vmem:[%s16 + $0x8] sm:$0xff]
    %v1290 = vld [vmem:[%s16 + $0x10] sm:$0xff]
    %v1291 = vld [vmem:[%s16 + $0x18] sm:$0xff]
    %v1292 = vld [vmem:[%s17] sm:$0x1]
    %v1294 = vlaneseq
    %v1295 = vshrl.u32 %v1294, 7
    %v1296 = vsub.s32 0, %v1295
    %v1297 = vrot.slane %v1292, %v1296
    %v1300 = vsel %vm71, %v1287, 0
    %1302 = vmatprep.subr.mxu0 0.0
    %1303 = vmatpush1.msra.mxu0 0.0
    %1304 = vmatprep.subr.mxu0 0.0
    %1305 = vmatpush1.msra.mxu0 0.0
    %1306 = vmatprep.subr.mxu0 0.0
    %1307 = vmatpush1.msra.mxu0 0.0
    %1308 = vmatprep.subr.mxu0 0.0
    %1309 = vmatpush1.msra.mxu0 0.0
    %1310 = vmatprep.subr.mxu0 0.0
    %1311 = vmatpush1.msra.mxu0 0.0
    %1312 = vmatprep.subr.mxu0 0.0
    %1313 = vmatpush1.msra.mxu0 0.0
    %1314 = vmatprep.subr.mxu0 0.0
    %1315 = vmatpush1.msra.mxu0 0.0
    %1316 = vmatprep.subr.mxu0 0.0
    %1317 = vmatpush1.msra.mxu0 0.0
    %1318 = vmatprep.subr.mxu0 0.0
    %1319 = vmatpush1.msra.mxu0 0.0
    %1320 = vmatprep.subr.mxu0 0.0
    %1321 = vmatpush1.msra.mxu0 0.0
    %1322 = vmatprep.subr.mxu0 0.0
    %1323 = vmatpush1.msra.mxu0 0.0
    %1324 = vmatprep.subr.mxu0 0.0
    %1325 = vmatpush1.msra.mxu0 0.0
    %1326 = vmatprep.subr.mxu0 0.0
    %1327 = vmatpush1.msra.mxu0 %v1291
    %1328 = vmatprep.subr.mxu0 0.0
    %1329 = vmatpush1.msra.mxu0 %v1290
    %1330 = vmatprep.subr.mxu0 0.0
    %1331 = vmatpush1.msra.mxu0 %v1289
    %1332 = vmatprep.subr.mxu0 0.0
    %1333 = vmatpush1.msra.mxu0 %v1288
    %1334 = vmatprep.subr.mxu0 0.0
    %1335 = vmatpush2.msra.mxu0 0.0
    %1336 = vmatprep.subr.mxu0 0.0
    %1337 = vmatpush2.msra.mxu0 0.0
    %1338 = vmatprep.subr.mxu0 0.0
    %1339 = vmatpush2.msra.mxu0 0.0
    %1340 = vmatprep.subr.mxu0 0.0
    %1341 = vmatpush2.msra.mxu0 0.0
    %1342 = vmatprep.subr.mxu0 0.0
    %1343 = vmatpush2.msra.mxu0 0.0
    %1344 = vmatprep.subr.mxu0 0.0
    %1345 = vmatpush2.msra.mxu0 0.0
    %1346 = vmatprep.subr.mxu0 0.0
    %1347 = vmatpush2.msra.mxu0 0.0
    %1348 = vmatprep.subr.mxu0 0.0
    %1349 = vmatpush2.msra.mxu0 0.0
    %1350 = vmatprep.subr.mxu0 0.0
    %1351 = vmatpush2.msra.mxu0 0.0
    %1352 = vmatprep.subr.mxu0 0.0
    %1353 = vmatpush2.msra.mxu0 0.0
    %1354 = vmatprep.subr.mxu0 0.0
    %1355 = vmatpush2.msra.mxu0 0.0
    %1356 = vmatprep.subr.mxu0 0.0
    %1357 = vmatpush2.msra.mxu0 0.0
    %1358 = vmatprep.subr.mxu0 0.0
    %1359 = vmatpush2.msra.mxu0 0.0
    %1360 = vmatprep.subr.mxu0 0.0
    %1361 = vmatpush2.msra.mxu0 0.0
    %1362 = vmatprep.subr.mxu0 0.0
    %1363 = vmatpush2.msra.mxu0 0.0
    %1364 = vmatprep.subr.mxu0 0.0
    %1365 = vmatpush2.msra.mxu0 0.0
    %1366 = vmatprep.mubr.f32.mxu0 0.0
    %1367 = vmatmul.mubr.f32.gmra.mxu0 %v1300
    %v1368 = vpop.f32.mrf.mxu0
    %v1369 = vadd.f32 %v1297, %v1368
    %v1370 = vpop.f32.mrf.mxu0
    %1371 = vdwg.mxu0
    %v1372 = vmul.f32 %v1369, 0.5
    %v1373 = vmul.f32 %v1369, 0.70710677
    %vm1374 = vcmp.ge.f32.partialorder %v1373, 0.0
    %v1375 = vsel %vm1374, 1.0, -1.0
    %v1376 = vand.u32 2147483647, %v1373
    %v1377 = vmul.f32 %v1376, 0.3275911
    %v1378 = vadd.f32 %v1377, 1.0
    %v1379 = vrcp.pop %v1378
    %v1380 = vmul.f32 1.0, %v1379
    %v1381 = vmul.f32 %v1380, 1.0614054
    %v1382 = vadd.f32 %v1381, -1.4531521
    %v1383 = vmul.f32 %v1382, %v1380
    %v1384 = vadd.f32 %v1383, 1.4214138
    %v1385 = vmul.f32 %v1384, %v1380
    %v1386 = vadd.f32 %v1385, -0.28449672
    %v1387 = vmul.f32 %v1386, %v1380
    %v1388 = vadd.f32 %v1387, 0.2548296
    %v1389 = vmul.f32 %v1388, %v1380
    %v1390 = vsub.f32 0.0, %v1376
    %v1391 = vmul.f32 %v1390, %v1376
    %v1392 = vmul.f32 %v1391, 1.442695
    %v1393 = vpow.pop %v1392
    %v1394 = vmul.f32 %v1389, %v1393
    %v1395 = vsub.f32 1.0, %v1394
    %v1396 = vmul.f32 %v1375, %v1395
    %v1397 = vadd.f32 %v1396, 1.0
    %v1398 = vmul.f32 %v1372, %v1397
    %v1399 = vld [vmem:[%s18] sm:$0xff]
    %v1400 = vld [vmem:[%s18 + $0x8] sm:$0xff]
    %v1401 = vld [vmem:[%s18 + $0x10] sm:$0xff]
    %v1402 = vld [vmem:[%s18 + $0x18] sm:$0xff]
    %v1403 = vld [vmem:[%s18 + $0x20] sm:$0xff]
    %v1404 = vld [vmem:[%s18 + $0x28] sm:$0xff]
    %v1405 = vld [vmem:[%s18 + $0x30] sm:$0xff]
    %v1406 = vld [vmem:[%s18 + $0x38] sm:$0xff]
    %v1407 = vld [vmem:[%s18 + $0x40] sm:$0xff]
    %v1408 = vld [vmem:[%s18 + $0x48] sm:$0xff]
    %v1409 = vld [vmem:[%s18 + $0x50] sm:$0xff]
    %v1410 = vld [vmem:[%s18 + $0x58] sm:$0xff]
    %v1411 = vld [vmem:[%s18 + $0x60] sm:$0xff]
    %v1412 = vld [vmem:[%s18 + $0x68] sm:$0xff]
    %v1413 = vld [vmem:[%s18 + $0x70] sm:$0xff]
    %v1414 = vld [vmem:[%s18 + $0x78] sm:$0xff]
    %v1415 = vld [vmem:[%s19] sm:$0x1]
    %v1417 = vlaneseq
    %v1418 = vshrl.u32 %v1417, 7
    %v1419 = vsub.s32 0, %v1418
    %v1420 = vrot.slane %v1415, %v1419
    %1422 = vmatprep.subr.mxu0 0.0
    %1423 = vmatpush1.msra.mxu0 %v1414
    %1424 = vmatprep.subr.mxu0 0.0
    %1425 = vmatpush1.msra.mxu0 %v1413
    %1426 = vmatprep.subr.mxu0 0.0
    %1427 = vmatpush1.msra.mxu0 %v1412
    %1428 = vmatprep.subr.mxu0 0.0
    %1429 = vmatpush1.msra.mxu0 %v1411
    %1430 = vmatprep.subr.mxu0 0.0
    %1431 = vmatpush1.msra.mxu0 %v1410
    %1432 = vmatprep.subr.mxu0 0.0
    %1433 = vmatpush1.msra.mxu0 %v1409
    %1434 = vmatprep.subr.mxu0 0.0
    %1435 = vmatpush1.msra.mxu0 %v1408
    %1436 = vmatprep.subr.mxu0 0.0
    %1437 = vmatpush1.msra.mxu0 %v1407
    %1438 = vmatprep.subr.mxu0 0.0
    %1439 = vmatpush1.msra.mxu0 %v1406
    %1440 = vmatprep.subr.mxu0 0.0
    %1441 = vmatpush1.msra.mxu0 %v1405
    %1442 = vmatprep.subr.mxu0 0.0
    %1443 = vmatpush1.msra.mxu0 %v1404
    %1444 = vmatprep.subr.mxu0 0.0
    %1445 = vmatpush1.msra.mxu0 %v1403
    %1446 = vmatprep.subr.mxu0 0.0
    %1447 = vmatpush1.msra.mxu0 %v1402
    %1448 = vmatprep.subr.mxu0 0.0
    %1449 = vmatpush1.msra.mxu0 %v1401
    %1450 = vmatprep.subr.mxu0 0.0
    %1451 = vmatpush1.msra.mxu0 %v1400
    %1452 = vmatprep.subr.mxu0 0.0
    %1453 = vmatpush1.msra.mxu0 %v1399
    %1454 = vmatprep.subr.mxu0 0.0
    %1455 = vmatpush2.msra.mxu0 0.0
    %1456 = vmatprep.subr.mxu0 0.0
    %1457 = vmatpush2.msra.mxu0 0.0
    %1458 = vmatprep.subr.mxu0 0.0
    %1459 = vmatpush2.msra.mxu0 0.0
    %1460 = vmatprep.subr.mxu0 0.0
    %1461 = vmatpush2.msra.mxu0 0.0
    %1462 = vmatprep.subr.mxu0 0.0
    %1463 = vmatpush2.msra.mxu0 0.0
    %1464 = vmatprep.subr.mxu0 0.0
    %1465 = vmatpush2.msra.mxu0 0.0
    %1466 = vmatprep.subr.mxu0 0.0
    %1467 = vmatpush2.msra.mxu0 0.0
    %1468 = vmatprep.subr.mxu0 0.0
    %1469 = vmatpush2.msra.mxu0 0.0
    %1470 = vmatprep.subr.mxu0 0.0
    %1471 = vmatpush2.msra.mxu0 0.0
    %1472 = vmatprep.subr.mxu0 0.0
    %1473 = vmatpush2.msra.mxu0 0.0
    %1474 = vmatprep.subr.mxu0 0.0
    %1475 = vmatpush2.msra.mxu0 0.0
    %1476 = vmatprep.subr.mxu0 0.0
    %1477 = vmatpush2.msra.mxu0 0.0
    %1478 = vmatprep.subr.mxu0 0.0
    %1479 = vmatpush2.msra.mxu0 0.0
    %1480 = vmatprep.subr.mxu0 0.0
    %1481 = vmatpush2.msra.mxu0 0.0
    %1482 = vmatprep.subr.mxu0 0.0
    %1483 = vmatpush2.msra.mxu0 0.0
    %1484 = vmatprep.subr.mxu0 0.0
    %1485 = vmatpush2.msra.mxu0 0.0
    %1486 = vmatprep.mubr.f32.mxu0 0.0
    %1487 = vmatmul.mubr.f32.gmra.mxu0 %v1398
    %v1488 = vpop.f32.mrf.mxu0
    %v1489 = vadd.f32 %v1420, %v1488
    %v1490 = vpop.f32.mrf.mxu0
    %1491 = vdwg.mxu0
    %v1492 = vld [vmem:[%s11] sm:$0x1]
    %v1494 = vlaneseq
    %v1495 = vshrl.u32 %v1494, 7
    %v1496 = vsub.s32 0, %v1495
    %v1497 = vrot.slane %v1492, %v1496
    %v1499 = vmul.f32 %v1497, %v1489
    %v1500 = vadd.f32 %v1258, %v1499
    %1501 = vst.msk [vmem:[#allocation2] sm:$0x3] %vm84, %v1500
    // Predicated region
    $region82: #{tpu_custom_call.1} parent=1 // pred_check
      _
    $region83: #{tpu_custom_call.1} parent=1 // pred_check_branch
      %1503 = sbr.rel (0) target = $region85
    $region84: #{tpu_custom_call.1} parent=1 // pred_region
      %s1505 = ssub.s32 32, 32
      %1506 = vsyncadd [#allocation3], %s1505
      %s1508 = sshll.u32 [#allocation2], 4
      %s1509 = int_to_ptr.vmem [resolvable:$true] %s1508
      %1511 = dma.vmem_to_hbm [thread:$0]  %s1509, 32, %s20, [#allocation3]
    $region85: #{tpu_custom_call.1} parent=1 // pred_fallthru
      _
    // Predicated region
    $region86: #{tpu_custom_call.1} parent=1 // pred_check
      _
    $region87: #{tpu_custom_call.1} parent=1 // pred_check_branch
      %1513 = sbr.rel (0) target = $region89
    $region88: #{tpu_custom_call.1} parent=1 // pred_region
      %1514 = dma.done [#allocation3], 32
    $region89: #{tpu_custom_call.1} parent=1 // pred_fallthru
      _
    %1515 = vsyncpa [#allocation3], 1

</llo_original>
